<compile_context>
chip_gen: v7x
topology: tpu7x:2x2x1
jax: 0.10.0
libtpu: 0.0.40
codegen_flags: <defaults>
</compile_context>

<pallas_src>
import numpy as np
import jax
import jax.numpy as jnp
from jax.experimental import pallas as pl
from jax.experimental.pallas import tpu as pltpu


def _leaky(x, slope):
    return jnp.where(x > 0, x, slope * x)


def _softplus(x):
    # torch.nn.Softplus default: beta=1, threshold=20.
    # (kept the log(1+exp) form: log/exp both run on the EUP slot; log1p gains are marginal)
    return jnp.where(x > 20.0, x, jnp.log(1.0 + jnp.exp(jnp.minimum(x, 20.0))))


def graphnet_kernel(
    x_ref, ssrc_ref, sdst_ref, ea_ref,
    w1_ref, b1_ref, w2_ref, b2_ref,
    mc1_ref, bc1_ref, mc2_ref, bc2_ref, fcw_ref, fcb_ref,
    gam_ref, bet_ref,
    wn_ref, bn_ref, we_ref, be_ref, attn_ref,
    pad_ref,
    out_ref,
):
    f32 = jnp.float32
    x = x_ref[...]                          # (N, F0) f32
    s_src = ssrc_ref[...].astype(f32)       # (E, N)  bf16 in HBM/VMEM, one exact cast to f32
    s_dst = sdst_ref[...].astype(f32)       # (E, N)
    s_dst_t = s_dst.T                       # (N, E)  built ONCE in-kernel, reused by all scatters
    ea = ea_ref[...]                        # (E, 2B)

    # ===================== Layer 0: GatedGCNLayer (aggr='add') =====================
    # Project at node level, then gather (cheaper than gather-then-project: N x F0 x F1).
    xw1 = jnp.dot(x, w1_ref[...], preferred_element_type=f32) + b1_ref[...]   # (N, F1)
    xw2 = jnp.dot(x, w2_ref[...], preferred_element_type=f32) + b2_ref[...]   # (N, F1)
    w2pj = jnp.dot(s_src, xw2, preferred_element_type=f32)                    # (E, F1) gather

    # GatedConvEdgeNet: Conv1d(2->8,k3,p1)+LeakyReLU(0.1) -> Conv1d(8->1,k3,p1)+LeakyReLU(0.1) -> fc(B->F1)
    h = _leaky(jnp.dot(ea, mc1_ref[...], preferred_element_type=f32) + bc1_ref[...], 0.1)   # (E, 8B)
    h = _leaky(jnp.dot(h, mc2_ref[...], preferred_element_type=f32) + bc2_ref[...], 0.1)    # (E, B)
    e_ij = jnp.dot(h, fcw_ref[...], preferred_element_type=f32) + fcb_ref[...]              # (E, F1)
    gate = _softplus(e_ij)
    msg = gate * w2pj                                                                       # (E, F1)
    aggr = jnp.dot(s_dst_t, msg, preferred_element_type=f32)                                # (N, F1) scatter-add

    h_nodes = xw1 + aggr
    # LayerNorm(out_dim), eps=1e-5 (biased variance), then ReLU (layer update)
    mu = jnp.mean(h_nodes, axis=-1, keepdims=True)
    var = jnp.mean((h_nodes - mu) ** 2, axis=-1, keepdims=True)
    h_ln = (h_nodes - mu) * jax.lax.rsqrt(var + 1e-5) * gam_ref[...] + bet_ref[...]
    x1 = jnp.maximum(h_ln, 0.0)
    # GraphNet inter-layer: ReLU (idempotent here) + dropout (identity in eval)

    # ===================== Layer 1: EdgeGATConv (heads=1, aggr='add') =====================
    xh = jnp.dot(x1, wn_ref[...], preferred_element_type=f32) + bn_ref[...]   # (N, F2)
    eh = jnp.dot(ea, we_ref[...], preferred_element_type=f32) + be_ref[...]   # (E, F2)
    xj2 = jnp.dot(s_src, xh, preferred_element_type=f32)                       # (E, F2) gather
    # attention logit as an MXU matmul against the (F2,1) attn column
    alpha = jnp.dot(xj2 + eh, attn_ref[...], preferred_element_type=f32)       # (E, 1)
    alpha = _leaky(alpha, 0.01)                                                # F.leaky_relu default slope
    # segment softmax over destination node (PyG softmax: max-shifted, eps 1e-16)
    neg = jnp.float32(-1e30)
    masked = jnp.where(s_dst > 0, alpha, neg)                                  # (E, N)
    node_max = jnp.max(masked, axis=0, keepdims=True)                          # (1, N)
    edge_max = jnp.sum(s_dst * node_max, axis=-1, keepdims=True)               # (E, 1)
    ealpha = jnp.exp(alpha - edge_max)
    node_sum = jnp.dot(s_dst_t, ealpha, preferred_element_type=f32)            # (N, 1)
    edge_sum = jnp.dot(s_dst, node_sum, preferred_element_type=f32)            # (E, 1)
    alpha_n = ealpha / (edge_sum + 1e-16)
    # attention dropout: identity in eval
    msg2 = xj2 * alpha_n
    out2 = jnp.dot(s_dst_t, msg2, preferred_element_type=f32)                  # (N, F2)

    # ===================== GraphNet head =====================
    m = jnp.max(out2, axis=-1, keepdims=True)
    ex = jnp.exp(out2 - m)
    sm = ex / jnp.sum(ex, axis=-1, keepdims=True)       # softmax over features (dim=1)
    sq = jnp.sqrt(sm + 1e-8)
    nrm = jnp.sqrt(jnp.sum(sq * sq, axis=-1, keepdims=True))
    res = sq / nrm                                       # (N, F2)

    # Lane-dense output: pad F2 -> 128 via an exact 0/1 projection matmul so the store
    # is a full, unmasked vreg write; wrapper slices [:, :F2] outside the kernel.
    out_ref[...] = jnp.dot(res, pad_ref[...], preferred_element_type=f32)      # (N, 128)


# --------------------------- glue: parameter construction ---------------------------

def conv1d_as_banded_matmul(w, b, B):
    """Fold a Conv1d(k=3, padding=1) into a (Cin*B, Cout*B) matrix + bias row.

    Flattening is channel-major: flat[ci*B + t] = x[ci, t], matching torch .view(-1, C, B).
    """
    w = np.asarray(w, np.float32)
    b = np.asarray(b, np.float32)
    Cout, Cin, K = w.shape
    M = np.zeros((Cin * B, Cout * B), np.float32)
    for co in range(Cout):
        for ci in range(Cin):
            for k in range(K):
                for t in range(B):
                    s = t + k - 1  # padding=1
                    if 0 <= s < B:
                        M[ci * B + s, co * B + t] = w[co, ci, k]
    bias = np.repeat(b, B).reshape(1, Cout * B).astype(np.float32)
    return jnp.asarray(M), jnp.asarray(bias)


PARAM_ORDER = ['w1', 'b1', 'w2', 'b2', 'mc1', 'bc1', 'mc2', 'bc2',
               'fcw', 'fcb', 'gam', 'bet', 'wn', 'bn', 'we', 'be', 'attn']


def init_params(key, F0, F1, F2, B):
    ks = jax.random.split(key, 16)

    def u(k, shape, scale):
        return jax.random.uniform(k, shape, jnp.float32, -scale, scale)

    p = {}
    # GatedGCNLayer: W1, W2 (Linear in->out stored transposed for x @ W)
    p['w1'] = u(ks[0], (F0, F1), 1.0 / np.sqrt(F0))
    p['b1'] = u(ks[1], (1, F1), 1.0 / np.sqrt(F0))
    p['w2'] = u(ks[2], (F0, F1), 1.0 / np.sqrt(F0))
    p['b2'] = u(ks[3], (1, F1), 1.0 / np.sqrt(F0))
    # GatedConvEdgeNet convs (kaiming-uniform-style fan_in scale, zero bias)
    cw1 = u(ks[4], (8, 2, 3), np.sqrt(6.0 / (2 * 3)))
    cw2 = u(ks[5], (1, 8, 3), np.sqrt(6.0 / (8 * 3)))
    p['mc1'], p['bc1'] = conv1d_as_banded_matmul(cw1, np.zeros((8,)), B)
    p['mc2'], p['bc2'] = conv1d_as_banded_matmul(cw2, np.zeros((1,)), B)
    p['fcw'] = u(ks[6], (B, F1), 1.0 / np.sqrt(B))
    p['fcb'] = u(ks[7], (1, F1), 1.0 / np.sqrt(B))
    # LayerNorm
    p['gam'] = jnp.ones((1, F1), jnp.float32)
    p['bet'] = jnp.zeros((1, F1), jnp.float32)
    # EdgeGATConv: lin_node, lin_edge, attn (xavier-uniform scale on (1,1,F2))
    p['wn'] = u(ks[8], (F1, F2), 1.0 / np.sqrt(F1))
    p['bn'] = u(ks[9], (1, F2), 1.0 / np.sqrt(F1))
    p['we'] = u(ks[10], (2 * B, F2), 1.0 / np.sqrt(2 * B))
    p['be'] = u(ks[11], (1, F2), 1.0 / np.sqrt(2 * B))
    p['attn'] = u(ks[12], (1, F2), np.sqrt(6.0 / (1 + F2)))
    return p


def graphnet_forward(x, edge_index, edge_attr, params, out_dim):
    N = x.shape[0]
    LANES = 128
    # One-hot gather/scatter matrices in bf16: 0/1 values are exact, half the bytes of f32.
    s_src = jax.nn.one_hot(edge_index[0], N, dtype=jnp.bfloat16)   # (E, N) gather matrix
    s_dst = jax.nn.one_hot(edge_index[1], N, dtype=jnp.bfloat16)   # (E, N) scatter matrix
    # attn passed as an (F2, 1) column so the attention logit is an MXU matmul.
    kparams = [params[k] for k in PARAM_ORDER]
    kparams[-1] = kparams[-1].T
    # exact 0/1 projection used to pad the (N, F2) result to a lane-dense (N, 128) store
    pad128 = jnp.eye(out_dim, LANES, dtype=jnp.float32)

    inputs = [x, s_src, s_dst, edge_attr] + kparams + [pad128]
    vmem = pl.BlockSpec(memory_space=pltpu.MemorySpace.VMEM)
    out_pad = pl.pallas_call(
        graphnet_kernel,
        out_shape=jax.ShapeDtypeStruct((N, LANES), jnp.float32),
        in_specs=[vmem] * len(inputs),
        out_specs=vmem,
        compiler_params=pltpu.CompilerParams(vmem_limit_bytes=32 * 1024 * 1024),
    )(*inputs)
    return out_pad[:, :out_dim]


# --------------------------- pure-JAX reference for validation ---------------------------

def reference_forward(x, edge_index, edge_attr, p):
    N = x.shape[0]
    with jax.default_matmul_precision("float32"):
        s_src = jax.nn.one_hot(edge_index[0], N, dtype=jnp.float32)
        s_dst = jax.nn.one_hot(edge_index[1], N, dtype=jnp.float32)
        # gated layer
        x_j = s_src @ x
        w2pj = x_j @ p['w2'] + p['b2']
        h = _leaky(edge_attr @ p['mc1'] + p['bc1'], 0.1)
        h = _leaky(h @ p['mc2'] + p['bc2'], 0.1)
        e_ij = h @ p['fcw'] + p['fcb']
        msg = _softplus(e_ij) * w2pj
        aggr = s_dst.T @ msg
        hn = x @ p['w1'] + p['b1'] + aggr
        mu = jnp.mean(hn, axis=-1, keepdims=True)
        var = jnp.mean((hn - mu) ** 2, axis=-1, keepdims=True)
        x1 = jnp.maximum((hn - mu) / jnp.sqrt(var + 1e-5) * p['gam'] + p['bet'], 0.0)
        # gat layer
        xh = x1 @ p['wn'] + p['bn']
        eh = edge_attr @ p['we'] + p['be']
        xj2 = s_src @ xh
        alpha = _leaky(jnp.sum((xj2 + eh) * p['attn'], axis=-1, keepdims=True), 0.01)
        masked = jnp.where(s_dst > 0, alpha, -1e30)
        node_max = jnp.max(masked, axis=0, keepdims=True)
        edge_max = jnp.sum(s_dst * node_max, axis=-1, keepdims=True)
        ealpha = jnp.exp(alpha - edge_max)
        node_sum = s_dst.T @ ealpha
        edge_sum = s_dst @ node_sum
        alpha_n = ealpha / (edge_sum + 1e-16)
        out2 = s_dst.T @ (xj2 * alpha_n)
        # head
        m = jnp.max(out2, axis=-1, keepdims=True)
        ex = jnp.exp(out2 - m)
        sm = ex / jnp.sum(ex, axis=-1, keepdims=True)
        sq = jnp.sqrt(sm + 1e-8)
        return sq / jnp.sqrt(jnp.sum(sq * sq, axis=-1, keepdims=True))


if __name__ == "__main__":
    # GraphNet(layer_sizes=[8, 16, 4], layer_types=['gated', 'gat'], B=8), eval mode.
    # TODO(synk): 'nn' (NNConv) and 'conv' (GCNConv) layer types are not part of this config.
    B = 8
    F0, F1, F2 = 8, 16, 4
    N, E = 8, 16

    key = jax.random.PRNGKey(0)
    kx, ke, kp = jax.random.split(key, 3)
    x = jax.random.normal(kx, (N, F0), jnp.float32)
    edge_attr = jax.random.normal(ke, (E, 2 * B), jnp.float32)
    src = np.arange(E, dtype=np.int32) % N
    dst = (np.arange(E, dtype=np.int32) * 3 + 1) % N
    edge_index = jnp.asarray(np.stack([src, dst]))   # (2, E) int32

    params = init_params(kp, F0, F1, F2, B)

    out = graphnet_forward(x, edge_index, edge_attr, params, F2)
    out = jax.block_until_ready(out)

    ref = jax.block_until_ready(reference_forward(x, edge_index, edge_attr, params))
    assert out.shape == (N, F2)
    assert np.all(np.isfinite(np.asarray(out)))
    np.testing.assert_allclose(np.asarray(out), np.asarray(ref), rtol=2e-3, atol=2e-3)
    print("KERNEL_OK")
</pallas_src>

<mosaic_0001>
module attributes {stable_mosaic.version = 11 : i64} {
  func.func @graphnet_kernel(%arg0: memref<8x8xf32, #tpu.memory_space<vmem>>, %arg1: memref<16x8xbf16, #tpu.memory_space<vmem>>, %arg2: memref<16x8xbf16, #tpu.memory_space<vmem>>, %arg3: memref<16x16xf32, #tpu.memory_space<vmem>>, %arg4: memref<8x16xf32, #tpu.memory_space<vmem>>, %arg5: memref<1x16xf32, #tpu.memory_space<vmem>>, %arg6: memref<8x16xf32, #tpu.memory_space<vmem>>, %arg7: memref<1x16xf32, #tpu.memory_space<vmem>>, %arg8: memref<16x64xf32, #tpu.memory_space<vmem>>, %arg9: memref<1x64xf32, #tpu.memory_space<vmem>>, %arg10: memref<64x8xf32, #tpu.memory_space<vmem>>, %arg11: memref<1x8xf32, #tpu.memory_space<vmem>>, %arg12: memref<8x16xf32, #tpu.memory_space<vmem>>, %arg13: memref<1x16xf32, #tpu.memory_space<vmem>>, %arg14: memref<1x16xf32, #tpu.memory_space<vmem>>, %arg15: memref<1x16xf32, #tpu.memory_space<vmem>>, %arg16: memref<16x4xf32, #tpu.memory_space<vmem>>, %arg17: memref<1x4xf32, #tpu.memory_space<vmem>>, %arg18: memref<16x4xf32, #tpu.memory_space<vmem>>, %arg19: memref<1x4xf32, #tpu.memory_space<vmem>>, %arg20: memref<4x1xf32, #tpu.memory_space<vmem>>, %arg21: memref<4x128xf32, #tpu.memory_space<vmem>>, %arg22: memref<8x128xf32, #tpu.memory_space<vmem>>) attributes {dimension_semantics = [], scalar_prefetch = 0 : i64, scratch_operands = 0 : i64, tpu.core_type = #tpu.core_type<tc>} {
    %c0 = arith.constant 0 : index
    %c0_0 = arith.constant 0 : index
    %0 = vector.load %arg0[%c0, %c0_0] : memref<8x8xf32, #tpu.memory_space<vmem>>, vector<8x8xf32>
    %c0_1 = arith.constant 0 : index
    %c0_2 = arith.constant 0 : index
    %1 = vector.load %arg1[%c0_1, %c0_2] : memref<16x8xbf16, #tpu.memory_space<vmem>>, vector<16x8xbf16>
    %2 = arith.extf %1 : vector<16x8xbf16> to vector<16x8xf32>
    %c0_3 = arith.constant 0 : index
    %c0_4 = arith.constant 0 : index
    %3 = vector.load %arg2[%c0_3, %c0_4] : memref<16x8xbf16, #tpu.memory_space<vmem>>, vector<16x8xbf16>
    %4 = arith.extf %3 : vector<16x8xbf16> to vector<16x8xf32>
    %5 = tpu.transpose %4, [1, 0] : vector<16x8xf32> -> vector<8x16xf32>
    %c0_5 = arith.constant 0 : index
    %c0_6 = arith.constant 0 : index
    %6 = vector.load %arg3[%c0_5, %c0_6] : memref<16x16xf32, #tpu.memory_space<vmem>>, vector<16x16xf32>
    %c0_7 = arith.constant 0 : index
    %c0_8 = arith.constant 0 : index
    %7 = vector.load %arg4[%c0_7, %c0_8] : memref<8x16xf32, #tpu.memory_space<vmem>>, vector<8x16xf32>
    %cst = arith.constant dense<0.000000e+00> : vector<8x16xf32>
    %8 = tpu.matmul %0, %7, %cst {dimension_numbers = #tpu.dot_dimension_numbers<[1], [0], [0], [1], [0, 0, 1, 1], [], []>} : vector<8x8xf32>, vector<8x16xf32>, vector<8x16xf32> -> vector<8x16xf32>
    %c0_9 = arith.constant 0 : index
    %c0_10 = arith.constant 0 : index
    %9 = vector.load %arg5[%c0_9, %c0_10] : memref<1x16xf32, #tpu.memory_space<vmem>>, vector<1x16xf32>
    %10 = vector.broadcast %9 : vector<1x16xf32> to vector<8x16xf32>
    %11 = arith.addf %8, %10 : vector<8x16xf32>
    %c0_11 = arith.constant 0 : index
    %c0_12 = arith.constant 0 : index
    %12 = vector.load %arg6[%c0_11, %c0_12] : memref<8x16xf32, #tpu.memory_space<vmem>>, vector<8x16xf32>
    %cst_13 = arith.constant dense<0.000000e+00> : vector<8x16xf32>
    %13 = tpu.matmul %0, %12, %cst_13 {dimension_numbers = #tpu.dot_dimension_numbers<[1], [0], [0], [1], [0, 0, 1, 1], [], []>} : vector<8x8xf32>, vector<8x16xf32>, vector<8x16xf32> -> vector<8x16xf32>
    %c0_14 = arith.constant 0 : index
    %c0_15 = arith.constant 0 : index
    %14 = vector.load %arg7[%c0_14, %c0_15] : memref<1x16xf32, #tpu.memory_space<vmem>>, vector<1x16xf32>
    %15 = vector.broadcast %14 : vector<1x16xf32> to vector<8x16xf32>
    %16 = arith.addf %13, %15 : vector<8x16xf32>
    %cst_16 = arith.constant dense<0.000000e+00> : vector<16x16xf32>
    %17 = tpu.matmul %2, %16, %cst_16 {dimension_numbers = #tpu.dot_dimension_numbers<[1], [0], [0], [1], [0, 0, 1, 1], [], []>} : vector<16x8xf32>, vector<8x16xf32>, vector<16x16xf32> -> vector<16x16xf32>
    %c0_17 = arith.constant 0 : index
    %c0_18 = arith.constant 0 : index
    %18 = vector.load %arg8[%c0_17, %c0_18] : memref<16x64xf32, #tpu.memory_space<vmem>>, vector<16x64xf32>
    %cst_19 = arith.constant dense<0.000000e+00> : vector<16x64xf32>
    %19 = tpu.matmul %6, %18, %cst_19 {dimension_numbers = #tpu.dot_dimension_numbers<[1], [0], [0], [1], [0, 0, 1, 1], [], []>} : vector<16x16xf32>, vector<16x64xf32>, vector<16x64xf32> -> vector<16x64xf32>
    %c0_20 = arith.constant 0 : index
    %c0_21 = arith.constant 0 : index
    %20 = vector.load %arg9[%c0_20, %c0_21] : memref<1x64xf32, #tpu.memory_space<vmem>>, vector<1x64xf32>
    %21 = vector.broadcast %20 : vector<1x64xf32> to vector<16x64xf32>
    %22 = arith.addf %19, %21 : vector<16x64xf32>
    %cst_22 = arith.constant 0.000000e+00 : f32
    %23 = vector.broadcast %cst_22 : f32 to vector<16x64xf32>
    %24 = arith.cmpf ogt, %22, %23 : vector<16x64xf32>
    %cst_23 = arith.constant 1.000000e-01 : f32
    %25 = vector.broadcast %cst_23 : f32 to vector<16x64xf32>
    %26 = arith.mulf %25, %22 : vector<16x64xf32>
    %27 = arith.select %24, %22, %26 : vector<16x64xi1>, vector<16x64xf32>
    %c0_24 = arith.constant 0 : index
    %c0_25 = arith.constant 0 : index
    %28 = vector.load %arg10[%c0_24, %c0_25] : memref<64x8xf32, #tpu.memory_space<vmem>>, vector<64x8xf32>
    %cst_26 = arith.constant dense<0.000000e+00> : vector<16x8xf32>
    %29 = tpu.matmul %27, %28, %cst_26 {dimension_numbers = #tpu.dot_dimension_numbers<[1], [0], [0], [1], [0, 0, 1, 1], [], []>} : vector<16x64xf32>, vector<64x8xf32>, vector<16x8xf32> -> vector<16x8xf32>
    %c0_27 = arith.constant 0 : index
    %c0_28 = arith.constant 0 : index
    %30 = vector.load %arg11[%c0_27, %c0_28] : memref<1x8xf32, #tpu.memory_space<vmem>>, vector<1x8xf32>
    %31 = vector.broadcast %30 : vector<1x8xf32> to vector<16x8xf32>
    %32 = arith.addf %29, %31 : vector<16x8xf32>
    %cst_29 = arith.constant 0.000000e+00 : f32
    %33 = vector.broadcast %cst_29 : f32 to vector<16x8xf32>
    %34 = arith.cmpf ogt, %32, %33 : vector<16x8xf32>
    %cst_30 = arith.constant 1.000000e-01 : f32
    %35 = vector.broadcast %cst_30 : f32 to vector<16x8xf32>
    %36 = arith.mulf %35, %32 : vector<16x8xf32>
    %37 = arith.select %34, %32, %36 : vector<16x8xi1>, vector<16x8xf32>
    %c0_31 = arith.constant 0 : index
    %c0_32 = arith.constant 0 : index
    %38 = vector.load %arg12[%c0_31, %c0_32] : memref<8x16xf32, #tpu.memory_space<vmem>>, vector<8x16xf32>
    %cst_33 = arith.constant dense<0.000000e+00> : vector<16x16xf32>
    %39 = tpu.matmul %37, %38, %cst_33 {dimension_numbers = #tpu.dot_dimension_numbers<[1], [0], [0], [1], [0, 0, 1, 1], [], []>} : vector<16x8xf32>, vector<8x16xf32>, vector<16x16xf32> -> vector<16x16xf32>
    %c0_34 = arith.constant 0 : index
    %c0_35 = arith.constant 0 : index
    %40 = vector.load %arg13[%c0_34, %c0_35] : memref<1x16xf32, #tpu.memory_space<vmem>>, vector<1x16xf32>
    %41 = vector.broadcast %40 : vector<1x16xf32> to vector<16x16xf32>
    %42 = arith.addf %39, %41 : vector<16x16xf32>
    %cst_36 = arith.constant 2.000000e+01 : f32
    %43 = vector.broadcast %cst_36 : f32 to vector<16x16xf32>
    %44 = arith.cmpf ogt, %42, %43 : vector<16x16xf32>
    %cst_37 = arith.constant 2.000000e+01 : f32
    %45 = vector.broadcast %cst_37 : f32 to vector<16x16xf32>
    %46 = arith.minimumf %42, %45 : vector<16x16xf32>
    %47 = math.exp %46 : vector<16x16xf32>
    %cst_38 = arith.constant 1.000000e+00 : f32
    %48 = vector.broadcast %cst_38 : f32 to vector<16x16xf32>
    %49 = arith.addf %48, %47 : vector<16x16xf32>
    %50 = math.log %49 : vector<16x16xf32>
    %51 = arith.select %44, %42, %50 : vector<16x16xi1>, vector<16x16xf32>
    %52 = arith.mulf %51, %17 : vector<16x16xf32>
    %cst_39 = arith.constant dense<0.000000e+00> : vector<8x16xf32>
    %53 = tpu.matmul %5, %52, %cst_39 {dimension_numbers = #tpu.dot_dimension_numbers<[1], [0], [0], [1], [0, 0, 1, 1], [], []>} : vector<8x16xf32>, vector<16x16xf32>, vector<8x16xf32> -> vector<8x16xf32>
    %54 = arith.addf %11, %53 : vector<8x16xf32>
    %cst_40 = arith.constant dense<0.000000e+00> : vector<8xf32>
    %55 = vector.multi_reduction <add>, %54, %cst_40 [1] : vector<8x16xf32> to vector<8xf32>
    %56 = vector.shape_cast %55 : vector<8xf32> to vector<8x1xf32>
    %cst_41 = arith.constant 1.600000e+01 : f32
    %57 = vector.broadcast %cst_41 : f32 to vector<8x1xf32>
    %58 = arith.divf %56, %57 : vector<8x1xf32>
    %59 = vector.broadcast %58 : vector<8x1xf32> to vector<8x16xf32>
    %60 = arith.subf %54, %59 : vector<8x16xf32>
    %61 = arith.mulf %60, %60 : vector<8x16xf32>
    %cst_42 = arith.constant dense<0.000000e+00> : vector<8xf32>
    %62 = vector.multi_reduction <add>, %61, %cst_42 [1] : vector<8x16xf32> to vector<8xf32>
    %63 = vector.shape_cast %62 : vector<8xf32> to vector<8x1xf32>
    %cst_43 = arith.constant 1.600000e+01 : f32
    %64 = vector.broadcast %cst_43 : f32 to vector<8x1xf32>
    %65 = arith.divf %63, %64 : vector<8x1xf32>
    %66 = vector.broadcast %58 : vector<8x1xf32> to vector<8x16xf32>
    %67 = arith.subf %54, %66 : vector<8x16xf32>
    %cst_44 = arith.constant 9.99999974E-6 : f32
    %68 = vector.broadcast %cst_44 : f32 to vector<8x1xf32>
    %69 = arith.addf %65, %68 : vector<8x1xf32>
    %70 = math.rsqrt %69 : vector<8x1xf32>
    %71 = vector.broadcast %70 : vector<8x1xf32> to vector<8x16xf32>
    %72 = arith.mulf %67, %71 : vector<8x16xf32>
    %c0_45 = arith.constant 0 : index
    %c0_46 = arith.constant 0 : index
    %73 = vector.load %arg14[%c0_45, %c0_46] : memref<1x16xf32, #tpu.memory_space<vmem>>, vector<1x16xf32>
    %74 = vector.broadcast %73 : vector<1x16xf32> to vector<8x16xf32>
    %75 = arith.mulf %72, %74 : vector<8x16xf32>
    %c0_47 = arith.constant 0 : index
    %c0_48 = arith.constant 0 : index
    %76 = vector.load %arg15[%c0_47, %c0_48] : memref<1x16xf32, #tpu.memory_space<vmem>>, vector<1x16xf32>
    %77 = vector.broadcast %76 : vector<1x16xf32> to vector<8x16xf32>
    %78 = arith.addf %75, %77 : vector<8x16xf32>
    %cst_49 = arith.constant 0.000000e+00 : f32
    %79 = vector.broadcast %cst_49 : f32 to vector<8x16xf32>
    %80 = arith.maximumf %78, %79 : vector<8x16xf32>
    %c0_50 = arith.constant 0 : index
    %c0_51 = arith.constant 0 : index
    %81 = vector.load %arg16[%c0_50, %c0_51] : memref<16x4xf32, #tpu.memory_space<vmem>>, vector<16x4xf32>
    %cst_52 = arith.constant dense<0.000000e+00> : vector<8x4xf32>
    %82 = tpu.matmul %80, %81, %cst_52 {dimension_numbers = #tpu.dot_dimension_numbers<[1], [0], [0], [1], [0, 0, 1, 1], [], []>} : vector<8x16xf32>, vector<16x4xf32>, vector<8x4xf32> -> vector<8x4xf32>
    %c0_53 = arith.constant 0 : index
    %c0_54 = arith.constant 0 : index
    %83 = vector.load %arg17[%c0_53, %c0_54] : memref<1x4xf32, #tpu.memory_space<vmem>>, vector<1x4xf32>
    %84 = vector.broadcast %83 : vector<1x4xf32> to vector<8x4xf32>
    %85 = arith.addf %82, %84 : vector<8x4xf32>
    %c0_55 = arith.constant 0 : index
    %c0_56 = arith.constant 0 : index
    %86 = vector.load %arg18[%c0_55, %c0_56] : memref<16x4xf32, #tpu.memory_space<vmem>>, vector<16x4xf32>
    %cst_57 = arith.constant dense<0.000000e+00> : vector<16x4xf32>
    %87 = tpu.matmul %6, %86, %cst_57 {dimension_numbers = #tpu.dot_dimension_numbers<[1], [0], [0], [1], [0, 0, 1, 1], [], []>} : vector<16x16xf32>, vector<16x4xf32>, vector<16x4xf32> -> vector<16x4xf32>
    %c0_58 = arith.constant 0 : index
    %c0_59 = arith.constant 0 : index
    %88 = vector.load %arg19[%c0_58, %c0_59] : memref<1x4xf32, #tpu.memory_space<vmem>>, vector<1x4xf32>
    %89 = vector.broadcast %88 : vector<1x4xf32> to vector<16x4xf32>
    %90 = arith.addf %87, %89 : vector<16x4xf32>
    %cst_60 = arith.constant dense<0.000000e+00> : vector<16x4xf32>
    %91 = tpu.matmul %2, %85, %cst_60 {dimension_numbers = #tpu.dot_dimension_numbers<[1], [0], [0], [1], [0, 0, 1, 1], [], []>} : vector<16x8xf32>, vector<8x4xf32>, vector<16x4xf32> -> vector<16x4xf32>
    %92 = arith.addf %91, %90 : vector<16x4xf32>
    %c0_61 = arith.constant 0 : index
    %c0_62 = arith.constant 0 : index
    %93 = vector.load %arg20[%c0_61, %c0_62] : memref<4x1xf32, #tpu.memory_space<vmem>>, vector<4x1xf32>
    %cst_63 = arith.constant dense<0.000000e+00> : vector<16x1xf32>
    %94 = tpu.matmul %92, %93, %cst_63 {dimension_numbers = #tpu.dot_dimension_numbers<[1], [0], [0], [1], [0, 0, 1, 1], [], []>} : vector<16x4xf32>, vector<4x1xf32>, vector<16x1xf32> -> vector<16x1xf32>
    %cst_64 = arith.constant 0.000000e+00 : f32
    %95 = vector.broadcast %cst_64 : f32 to vector<16x1xf32>
    %96 = arith.cmpf ogt, %94, %95 : vector<16x1xf32>
    %cst_65 = arith.constant 0.00999999977 : f32
    %97 = vector.broadcast %cst_65 : f32 to vector<16x1xf32>
    %98 = arith.mulf %97, %94 : vector<16x1xf32>
    %99 = arith.select %96, %94, %98 : vector<16x1xi1>, vector<16x1xf32>
    %cst_66 = arith.constant 0.000000e+00 : f32
    %100 = vector.broadcast %cst_66 : f32 to vector<16x8xf32>
    %101 = arith.cmpf ogt, %4, %100 : vector<16x8xf32>
    %cst_67 = arith.constant -1.000000e+30 : f32
    %102 = vector.shape_cast %99 : vector<16x1xf32> to vector<16x1xf32>
    %103 = vector.broadcast %102 : vector<16x1xf32> to vector<16x8xf32>
    %104 = vector.broadcast %cst_67 : f32 to vector<16x8xf32>
    %105 = arith.select %101, %103, %104 : vector<16x8xi1>, vector<16x8xf32>
    %cst_68 = arith.constant dense<0xFF800000> : vector<8xf32>
    %106 = vector.multi_reduction <maximumf>, %105, %cst_68 [0] : vector<16x8xf32> to vector<8xf32>
    %107 = vector.shape_cast %106 : vector<8xf32> to vector<1x8xf32>
    %108 = vector.broadcast %107 : vector<1x8xf32> to vector<16x8xf32>
    %109 = arith.mulf %4, %108 : vector<16x8xf32>
    %cst_69 = arith.constant dense<0.000000e+00> : vector<16xf32>
    %110 = vector.multi_reduction <add>, %109, %cst_69 [1] : vector<16x8xf32> to vector<16xf32>
    %111 = vector.shape_cast %110 : vector<16xf32> to vector<16x1xf32>
    %112 = arith.subf %99, %111 : vector<16x1xf32>
    %113 = math.exp %112 : vector<16x1xf32>
    %cst_70 = arith.constant dense<0.000000e+00> : vector<8x1xf32>
    %114 = tpu.matmul %5, %113, %cst_70 {dimension_numbers = #tpu.dot_dimension_numbers<[1], [0], [0], [1], [0, 0, 1, 1], [], []>} : vector<8x16xf32>, vector<16x1xf32>, vector<8x1xf32> -> vector<8x1xf32>
    %cst_71 = arith.constant dense<0.000000e+00> : vector<16x1xf32>
    %115 = tpu.matmul %4, %114, %cst_71 {dimension_numbers = #tpu.dot_dimension_numbers<[1], [0], [0], [1], [0, 0, 1, 1], [], []>} : vector<16x8xf32>, vector<8x1xf32>, vector<16x1xf32> -> vector<16x1xf32>
    %cst_72 = arith.constant 1.000000e-16 : f32
    %116 = vector.broadcast %cst_72 : f32 to vector<16x1xf32>
    %117 = arith.addf %115, %116 : vector<16x1xf32>
    %118 = arith.divf %113, %117 : vector<16x1xf32>
    %119 = vector.broadcast %118 : vector<16x1xf32> to vector<16x4xf32>
    %120 = arith.mulf %91, %119 : vector<16x4xf32>
    %cst_73 = arith.constant dense<0.000000e+00> : vector<8x4xf32>
    %121 = tpu.matmul %5, %120, %cst_73 {dimension_numbers = #tpu.dot_dimension_numbers<[1], [0], [0], [1], [0, 0, 1, 1], [], []>} : vector<8x16xf32>, vector<16x4xf32>, vector<8x4xf32> -> vector<8x4xf32>
    %cst_74 = arith.constant dense<0xFF800000> : vector<8xf32>
    %122 = vector.multi_reduction <maximumf>, %121, %cst_74 [1] : vector<8x4xf32> to vector<8xf32>
    %123 = vector.shape_cast %122 : vector<8xf32> to vector<8x1xf32>
    %124 = vector.broadcast %123 : vector<8x1xf32> to vector<8x4xf32>
    %125 = arith.subf %121, %124 : vector<8x4xf32>
    %126 = math.exp %125 : vector<8x4xf32>
    %cst_75 = arith.constant dense<0.000000e+00> : vector<8xf32>
    %127 = vector.multi_reduction <add>, %126, %cst_75 [1] : vector<8x4xf32> to vector<8xf32>
    %128 = vector.shape_cast %127 : vector<8xf32> to vector<8x1xf32>
    %129 = vector.broadcast %128 : vector<8x1xf32> to vector<8x4xf32>
    %130 = arith.divf %126, %129 : vector<8x4xf32>
    %cst_76 = arith.constant 9.99999993E-9 : f32
    %131 = vector.broadcast %cst_76 : f32 to vector<8x4xf32>
    %132 = arith.addf %130, %131 : vector<8x4xf32>
    %133 = math.sqrt %132 : vector<8x4xf32>
    %134 = arith.mulf %133, %133 : vector<8x4xf32>
    %cst_77 = arith.constant dense<0.000000e+00> : vector<8xf32>
    %135 = vector.multi_reduction <add>, %134, %cst_77 [1] : vector<8x4xf32> to vector<8xf32>
    %136 = vector.shape_cast %135 : vector<8xf32> to vector<8x1xf32>
    %137 = math.sqrt %136 : vector<8x1xf32>
    %138 = vector.broadcast %137 : vector<8x1xf32> to vector<8x4xf32>
    %139 = arith.divf %133, %138 : vector<8x4xf32>
    %c0_78 = arith.constant 0 : index
    %c0_79 = arith.constant 0 : index
    %140 = vector.load %arg21[%c0_78, %c0_79] : memref<4x128xf32, #tpu.memory_space<vmem>>, vector<4x128xf32>
    %cst_80 = arith.constant dense<0.000000e+00> : vector<8x128xf32>
    %141 = tpu.matmul %139, %140, %cst_80 {dimension_numbers = #tpu.dot_dimension_numbers<[1], [0], [0], [1], [0, 0, 1, 1], [], []>} : vector<8x4xf32>, vector<4x128xf32>, vector<8x128xf32> -> vector<8x128xf32>
    %c0_81 = arith.constant 0 : index
    %c0_82 = arith.constant 0 : index
    %142 = vector.load %arg22[%c0_81, %c0_82] : memref<8x128xf32, #tpu.memory_space<vmem>>, vector<8x128xf32>
    tpu.vector_store %arg22[%c0_81, %c0_82], %141 {strides = array<i32>} : memref<8x128xf32, #tpu.memory_space<vmem>>, vector<8x128xf32>,
    return
  }
}

</mosaic_0001>

<llo_original>
// kernel: tpu_custom_call.1
$region0: #{tpu_custom_call.1}
  #allocation0 [shape = 'u32[]', space=smem, size = 0x4, offset = 0x4, fixed_abs, tag = 'smem constant byte address 0x4 - core index']
  #allocation1 [shape = 'u32[144,128]{1,0:T(1,128)}', space=vmem, size = 0x12000, scoped, tag = 'internal scratch']
  %s0 = inlined_call_operand.vmem [shape: f32[8,8], index: 0, kind: input, shape index: {}]
  %s1 = inlined_call_operand.vmem [shape: bf16[16,8], index: 1, kind: input, shape index: {}]
  %s2 = inlined_call_operand.vmem [shape: bf16[16,8], index: 2, kind: input, shape index: {}]
  %s3 = inlined_call_operand.vmem [shape: f32[16,16], index: 3, kind: input, shape index: {}]
  %s4 = inlined_call_operand.vmem [shape: f32[8,16], index: 4, kind: input, shape index: {}]
  %s5 = inlined_call_operand.vmem [shape: f32[1,16], index: 5, kind: input, shape index: {}]
  %s6 = inlined_call_operand.vmem [shape: f32[8,16], index: 6, kind: input, shape index: {}]
  %s7 = inlined_call_operand.vmem [shape: f32[1,16], index: 7, kind: input, shape index: {}]
  %s8 = inlined_call_operand.vmem [shape: f32[16,64], index: 8, kind: input, shape index: {}]
  %s9 = inlined_call_operand.vmem [shape: f32[1,64], index: 9, kind: input, shape index: {}]
  %s10 = inlined_call_operand.vmem [shape: f32[64,8], index: 10, kind: input, shape index: {}]
  %s11 = inlined_call_operand.vmem [shape: f32[1,8], index: 11, kind: input, shape index: {}]
  %s12 = inlined_call_operand.vmem [shape: f32[8,16], index: 12, kind: input, shape index: {}]
  %s13 = inlined_call_operand.vmem [shape: f32[1,16], index: 13, kind: input, shape index: {}]
  %s14 = inlined_call_operand.vmem [shape: f32[1,16], index: 14, kind: input, shape index: {}]
  %s15 = inlined_call_operand.vmem [shape: f32[1,16], index: 15, kind: input, shape index: {}]
  %s16 = inlined_call_operand.vmem [shape: f32[16,4], index: 16, kind: input, shape index: {}]
  %s17 = inlined_call_operand.vmem [shape: f32[1,4], index: 17, kind: input, shape index: {}]
  %s18 = inlined_call_operand.vmem [shape: f32[16,4], index: 18, kind: input, shape index: {}]
  %s19 = inlined_call_operand.vmem [shape: f32[1,4], index: 19, kind: input, shape index: {}]
  %s20 = inlined_call_operand.vmem [shape: f32[4,1], index: 20, kind: input, shape index: {}]
  %s21 = inlined_call_operand.vmem [shape: f32[4,128], index: 21, kind: input, shape index: {}]
  %s22 = inlined_call_operand.hbm [shape: f32[8,128], index: 22, kind: output, shape index: {}]
  %s23 = sld [smem:[#allocation0]]
  $region98: #{tpu_custom_call.1} parent=0
    _
  %s25 = ssub.s32 1, %s23
  %s26 = scalar_select 0, %s25, %s23
  $region1: #{tpu_custom_call.1} parent=0
    #allocation2 [shape = 'u8[4096]{0}', space=vmem, size = 0x1000, scoped, tag = 'output window, operand 0, single buffered']
    #allocation3 [shape = 's32[1]{0}', space=sflag, size = 0x4, scoped, tag = 'scoped memory for tpu_custom_call.1']
    %27 = vsyncpa [#allocation3], 0
    // Predicated region
    $region2: #{tpu_custom_call.1} parent=1 // pred_check
      _
    $region3: #{tpu_custom_call.1} parent=1 // pred_check_branch
      %29 = sbr.rel (0) target = $region5
    $region4: #{tpu_custom_call.1} parent=1 // pred_region
      _
    $region5: #{tpu_custom_call.1} parent=1 // pred_fallthru
      _
    // Predicated region
    $region6: #{tpu_custom_call.1} parent=1 // pred_check
      _
    $region7: #{tpu_custom_call.1} parent=1 // pred_check_branch
      %31 = sbr.rel (0) target = $region9
    $region8: #{tpu_custom_call.1} parent=1 // pred_region
      _
    $region9: #{tpu_custom_call.1} parent=1 // pred_fallthru
      _
    // Predicated region
    $region10: #{tpu_custom_call.1} parent=1 // pred_check
      _
    $region11: #{tpu_custom_call.1} parent=1 // pred_check_branch
      %33 = sbr.rel (0) target = $region13
    $region12: #{tpu_custom_call.1} parent=1 // pred_region
      _
    $region13: #{tpu_custom_call.1} parent=1 // pred_fallthru
      _
    // Predicated region
    $region14: #{tpu_custom_call.1} parent=1 // pred_check
      _
    $region15: #{tpu_custom_call.1} parent=1 // pred_check_branch
      %35 = sbr.rel (0) target = $region17
    $region16: #{tpu_custom_call.1} parent=1 // pred_region
      _
    $region17: #{tpu_custom_call.1} parent=1 // pred_fallthru
      _
    // Predicated region
    $region18: #{tpu_custom_call.1} parent=1 // pred_check
      _
    $region19: #{tpu_custom_call.1} parent=1 // pred_check_branch
      %37 = sbr.rel (0) target = $region21
    $region20: #{tpu_custom_call.1} parent=1 // pred_region
      _
    $region21: #{tpu_custom_call.1} parent=1 // pred_fallthru
      _
    // Predicated region
    $region22: #{tpu_custom_call.1} parent=1 // pred_check
      _
    $region23: #{tpu_custom_call.1} parent=1 // pred_check_branch
      %39 = sbr.rel (0) target = $region25
    $region24: #{tpu_custom_call.1} parent=1 // pred_region
      _
    $region25: #{tpu_custom_call.1} parent=1 // pred_fallthru
      _
    // Predicated region
    $region26: #{tpu_custom_call.1} parent=1 // pred_check
      _
    $region27: #{tpu_custom_call.1} parent=1 // pred_check_branch
      %41 = sbr.rel (0) target = $region29
    $region28: #{tpu_custom_call.1} parent=1 // pred_region
      _
    $region29: #{tpu_custom_call.1} parent=1 // pred_fallthru
      _
    // Predicated region
    $region30: #{tpu_custom_call.1} parent=1 // pred_check
      _
    $region31: #{tpu_custom_call.1} parent=1 // pred_check_branch
      %43 = sbr.rel (0) target = $region33
    $region32: #{tpu_custom_call.1} parent=1 // pred_region
      _
    $region33: #{tpu_custom_call.1} parent=1 // pred_fallthru
      _
    // Predicated region
    $region34: #{tpu_custom_call.1} parent=1 // pred_check
      _
    $region35: #{tpu_custom_call.1} parent=1 // pred_check_branch
      %45 = sbr.rel (0) target = $region37
    $region36: #{tpu_custom_call.1} parent=1 // pred_region
      _
    $region37: #{tpu_custom_call.1} parent=1 // pred_fallthru
      _
    // Predicated region
    $region38: #{tpu_custom_call.1} parent=1 // pred_check
      _
    $region39: #{tpu_custom_call.1} parent=1 // pred_check_branch
      %47 = sbr.rel (0) target = $region41
    $region40: #{tpu_custom_call.1} parent=1 // pred_region
      _
    $region41: #{tpu_custom_call.1} parent=1 // pred_fallthru
      _
    // Predicated region
    $region42: #{tpu_custom_call.1} parent=1 // pred_check
      _
    $region43: #{tpu_custom_call.1} parent=1 // pred_check_branch
      %49 = sbr.rel (0) target = $region45
    $region44: #{tpu_custom_call.1} parent=1 // pred_region
      _
    $region45: #{tpu_custom_call.1} parent=1 // pred_fallthru
      _
    // Predicated region
    $region46: #{tpu_custom_call.1} parent=1 // pred_check
      _
    $region47: #{tpu_custom_call.1} parent=1 // pred_check_branch
      %51 = sbr.rel (0) target = $region49
    $region48: #{tpu_custom_call.1} parent=1 // pred_region
      _
    $region49: #{tpu_custom_call.1} parent=1 // pred_fallthru
      _
    // Predicated region
    $region50: #{tpu_custom_call.1} parent=1 // pred_check
      _
    $region51: #{tpu_custom_call.1} parent=1 // pred_check_branch
      %53 = sbr.rel (0) target = $region53
    $region52: #{tpu_custom_call.1} parent=1 // pred_region
      _
    $region53: #{tpu_custom_call.1} parent=1 // pred_fallthru
      _
    // Predicated region
    $region54: #{tpu_custom_call.1} parent=1 // pred_check
      _
    $region55: #{tpu_custom_call.1} parent=1 // pred_check_branch
      %55 = sbr.rel (0) target = $region57
    $region56: #{tpu_custom_call.1} parent=1 // pred_region
      _
    $region57: #{tpu_custom_call.1} parent=1 // pred_fallthru
      _
    // Predicated region
    $region58: #{tpu_custom_call.1} parent=1 // pred_check
      _
    $region59: #{tpu_custom_call.1} parent=1 // pred_check_branch
      %57 = sbr.rel (0) target = $region61
    $region60: #{tpu_custom_call.1} parent=1 // pred_region
      _
    $region61: #{tpu_custom_call.1} parent=1 // pred_fallthru
      _
    // Predicated region
    $region62: #{tpu_custom_call.1} parent=1 // pred_check
      _
    $region63: #{tpu_custom_call.1} parent=1 // pred_check_branch
      %59 = sbr.rel (0) target = $region65
    $region64: #{tpu_custom_call.1} parent=1 // pred_region
      _
    $region65: #{tpu_custom_call.1} parent=1 // pred_fallthru
      _
    // Predicated region
    $region66: #{tpu_custom_call.1} parent=1 // pred_check
      _
    $region67: #{tpu_custom_call.1} parent=1 // pred_check_branch
      %61 = sbr.rel (0) target = $region69
    $region68: #{tpu_custom_call.1} parent=1 // pred_region
      _
    $region69: #{tpu_custom_call.1} parent=1 // pred_fallthru
      _
    // Predicated region
    $region70: #{tpu_custom_call.1} parent=1 // pred_check
      _
    $region71: #{tpu_custom_call.1} parent=1 // pred_check_branch
      %63 = sbr.rel (0) target = $region73
    $region72: #{tpu_custom_call.1} parent=1 // pred_region
      _
    $region73: #{tpu_custom_call.1} parent=1 // pred_fallthru
      _
    // Predicated region
    $region74: #{tpu_custom_call.1} parent=1 // pred_check
      _
    $region75: #{tpu_custom_call.1} parent=1 // pred_check_branch
      %65 = sbr.rel (0) target = $region77
    $region76: #{tpu_custom_call.1} parent=1 // pred_region
      _
    $region77: #{tpu_custom_call.1} parent=1 // pred_fallthru
      _
    // Predicated region
    $region78: #{tpu_custom_call.1} parent=1 // pred_check
      _
    $region79: #{tpu_custom_call.1} parent=1 // pred_check_branch
      %67 = sbr.rel (0) target = $region81
    $region80: #{tpu_custom_call.1} parent=1 // pred_region
      _
    $region81: #{tpu_custom_call.1} parent=1 // pred_fallthru
      _
    // Predicated region
    $region82: #{tpu_custom_call.1} parent=1 // pred_check
      _
    $region83: #{tpu_custom_call.1} parent=1 // pred_check_branch
      %69 = sbr.rel (0) target = $region85
    $region84: #{tpu_custom_call.1} parent=1 // pred_region
      _
    $region85: #{tpu_custom_call.1} parent=1 // pred_fallthru
      _
    // Predicated region
    $region86: #{tpu_custom_call.1} parent=1 // pred_check
      _
    $region87: #{tpu_custom_call.1} parent=1 // pred_check_branch
      %71 = sbr.rel (0) target = $region89
    $region88: #{tpu_custom_call.1} parent=1 // pred_region
      _
    $region89: #{tpu_custom_call.1} parent=1 // pred_fallthru
      _
    %v72 = vld [vmem:[%s0] sm:$0xff]
    %v73 = vld [vmem:[%s1] sm:$0xf]
    %v74 = vld [vmem:[%s1 + $0x4] sm:$0xf]
    %v75 = vunpack.c.l.bf16 %v73
    %v76 = vunpack.c.l.bf16 %v74
    %v77 = vld [vmem:[%s2] sm:$0xf]
    %v78 = vld [vmem:[%s2 + $0x4] sm:$0xf]
    %v79 = vunpack.c.l.bf16 %v77
    %v80 = vunpack.c.l.bf16 %v78
    %81 = vxpose.xlu0.b32.start [1/16] %v79, 128
    %82 = vxpose.xlu0.b32.cont [2/16] %v80, 128
    %83 = vxpose.xlu0.b32.cont [3/16] 0.0, 128
    %84 = vxpose.xlu0.b32.cont [4/16] 0.0, 128
    %85 = vxpose.xlu0.b32.cont [5/16] 0.0, 128
    %86 = vxpose.xlu0.b32.cont [6/16] 0.0, 128
    %87 = vxpose.xlu0.b32.cont [7/16] 0.0, 128
    %88 = vxpose.xlu0.b32.cont [8/16] 0.0, 128
    %89 = vxpose.xlu0.b32.cont [9/16] 0.0, 128
    %90 = vxpose.xlu0.b32.cont [10/16] 0.0, 128
    %91 = vxpose.xlu0.b32.cont [11/16] 0.0, 128
    %92 = vxpose.xlu0.b32.cont [12/16] 0.0, 128
    %93 = vxpose.xlu0.b32.cont [13/16] 0.0, 128
    %94 = vxpose.xlu0.b32.cont [14/16] 0.0, 128
    %95 = vxpose.xlu0.b32.cont [15/16] 0.0, 128
    %96 = vxpose.xlu0.b32.end [16/16] 0.0, 128
    %v97 = vpop.trf.xlu0
    %v98 = vpop.trf.xlu0
    %v99 = vpop.trf.xlu0
    %v100 = vpop.trf.xlu0
    %v101 = vpop.trf.xlu0
    %v102 = vpop.trf.xlu0
    %v103 = vpop.trf.xlu0
    %v104 = vpop.trf.xlu0
    %v105 = vpop.trf.xlu0
    %v106 = vpop.trf.xlu0
    %v107 = vpop.trf.xlu0
    %v108 = vpop.trf.xlu0
    %v109 = vpop.trf.xlu0
    %v110 = vpop.trf.xlu0
    %v111 = vpop.trf.xlu0
    %v112 = vpop.trf.xlu0
    %v113 = vld [vmem:[%s3] sm:$0xff]
    %v114 = vld [vmem:[%s3 + $0x8] sm:$0xff]
    %v115 = vld [vmem:[%s4] sm:$0xff]
    %v116 = vld [vmem:[%s5] sm:$0x1]
    %v118 = vlaneseq
    %v119 = vshrl.u32 %v118, 7
    %v120 = vsub.s32 0, %v119
    %v121 = vrot.slane %v116, %v120
    %vm123 = vcmask 64512
    %v125 = vsel %vm123, %v72, 0
    %127 = vmatprep.subr.mxu0 0.0
    %128 = vmatpush1.msra.mxu0 %v115
    %129 = vmatprep.subr.mxu0 0.0
    %130 = vmatpush1.msra.mxu0 0.0
    %131 = vmatprep.subr.mxu0 0.0
    %132 = vmatpush1.msra.mxu0 0.0
    %133 = vmatprep.subr.mxu0 0.0
    %134 = vmatpush1.msra.mxu0 0.0
    %135 = vmatprep.subr.mxu0 0.0
    %136 = vmatpush1.msra.mxu0 0.0
    %137 = vmatprep.subr.mxu0 0.0
    %138 = vmatpush1.msra.mxu0 0.0
    %139 = vmatprep.subr.mxu0 0.0
    %140 = vmatpush1.msra.mxu0 0.0
    %141 = vmatprep.subr.mxu0 0.0
    %142 = vmatpush1.msra.mxu0 0.0
    %143 = vmatprep.subr.mxu0 0.0
    %144 = vmatpush1.msra.mxu0 0.0
    %145 = vmatprep.subr.mxu0 0.0
    %146 = vmatpush1.msra.mxu0 0.0
    %147 = vmatprep.subr.mxu0 0.0
    %148 = vmatpush1.msra.mxu0 0.0
    %149 = vmatprep.subr.mxu0 0.0
    %150 = vmatpush1.msra.mxu0 0.0
    %151 = vmatprep.subr.mxu0 0.0
    %152 = vmatpush1.msra.mxu0 0.0
    %153 = vmatprep.subr.mxu0 0.0
    %154 = vmatpush1.msra.mxu0 0.0
    %155 = vmatprep.subr.mxu0 0.0
    %156 = vmatpush1.msra.mxu0 0.0
    %157 = vmatprep.subr.mxu0 0.0
    %158 = vmatpush1.msra.mxu0 0.0
    %159 = vmatprep.subr.mxu0 0.0
    %160 = vmatpush1.msra.mxu0 0.0
    %161 = vmatprep.subr.mxu0 0.0
    %162 = vmatpush1.msra.mxu0 0.0
    %163 = vmatprep.subr.mxu0 0.0
    %164 = vmatpush1.msra.mxu0 0.0
    %165 = vmatprep.subr.mxu0 0.0
    %166 = vmatpush1.msra.mxu0 0.0
    %167 = vmatprep.subr.mxu0 0.0
    %168 = vmatpush1.msra.mxu0 0.0
    %169 = vmatprep.subr.mxu0 0.0
    %170 = vmatpush1.msra.mxu0 0.0
    %171 = vmatprep.subr.mxu0 0.0
    %172 = vmatpush1.msra.mxu0 0.0
    %173 = vmatprep.subr.mxu0 0.0
    %174 = vmatpush1.msra.mxu0 0.0
    %175 = vmatprep.subr.mxu0 0.0
    %176 = vmatpush1.msra.mxu0 0.0
    %177 = vmatprep.subr.mxu0 0.0
    %178 = vmatpush1.msra.mxu0 0.0
    %179 = vmatprep.subr.mxu0 0.0
    %180 = vmatpush1.msra.mxu0 0.0
    %181 = vmatprep.subr.mxu0 0.0
    %182 = vmatpush1.msra.mxu0 0.0
    %183 = vmatprep.subr.mxu0 0.0
    %184 = vmatpush1.msra.mxu0 0.0
    %185 = vmatprep.subr.mxu0 0.0
    %186 = vmatpush1.msra.mxu0 0.0
    %187 = vmatprep.subr.mxu0 0.0
    %188 = vmatpush1.msra.mxu0 0.0
    %189 = vmatprep.subr.mxu0 0.0
    %190 = vmatpush1.msra.mxu0 0.0
    %191 = vmatprep.mubr.f32.mxu0 0.0
    %192 = vmatmul.mubr.f32.gmra.mrb[0].mxu0 %v125
    %v193 = vpop.f32.mrb[0].mxu0
    %v194 = vadd.f32 %v121, %v193
    %v195 = vpop.f32.mrb[0].mxu0
    %196 = vdwg.mxu0
    %v197 = vld [vmem:[%s6] sm:$0xff]
    %v198 = vld [vmem:[%s7] sm:$0x1]
    %v200 = vlaneseq
    %v201 = vshrl.u32 %v200, 7
    %v202 = vsub.s32 0, %v201
    %v203 = vrot.slane %v198, %v202
    %205 = vmatprep.subr.mxu0 0.0
    %206 = vmatpush1.msra.mxu0 %v197
    %207 = vmatprep.subr.mxu0 0.0
    %208 = vmatpush1.msra.mxu0 0.0
    %209 = vmatprep.subr.mxu0 0.0
    %210 = vmatpush1.msra.mxu0 0.0
    %211 = vmatprep.subr.mxu0 0.0
    %212 = vmatpush1.msra.mxu0 0.0
    %213 = vmatprep.subr.mxu0 0.0
    %214 = vmatpush1.msra.mxu0 0.0
    %215 = vmatprep.subr.mxu0 0.0
    %216 = vmatpush1.msra.mxu0 0.0
    %217 = vmatprep.subr.mxu0 0.0
    %218 = vmatpush1.msra.mxu0 0.0
    %219 = vmatprep.subr.mxu0 0.0
    %220 = vmatpush1.msra.mxu0 0.0
    %221 = vmatprep.subr.mxu0 0.0
    %222 = vmatpush1.msra.mxu0 0.0
    %223 = vmatprep.subr.mxu0 0.0
    %224 = vmatpush1.msra.mxu0 0.0
    %225 = vmatprep.subr.mxu0 0.0
    %226 = vmatpush1.msra.mxu0 0.0
    %227 = vmatprep.subr.mxu0 0.0
    %228 = vmatpush1.msra.mxu0 0.0
    %229 = vmatprep.subr.mxu0 0.0
    %230 = vmatpush1.msra.mxu0 0.0
    %231 = vmatprep.subr.mxu0 0.0
    %232 = vmatpush1.msra.mxu0 0.0
    %233 = vmatprep.subr.mxu0 0.0
    %234 = vmatpush1.msra.mxu0 0.0
    %235 = vmatprep.subr.mxu0 0.0
    %236 = vmatpush1.msra.mxu0 0.0
    %237 = vmatprep.subr.mxu0 0.0
    %238 = vmatpush1.msra.mxu0 0.0
    %239 = vmatprep.subr.mxu0 0.0
    %240 = vmatpush1.msra.mxu0 0.0
    %241 = vmatprep.subr.mxu0 0.0
    %242 = vmatpush1.msra.mxu0 0.0
    %243 = vmatprep.subr.mxu0 0.0
    %244 = vmatpush1.msra.mxu0 0.0
    %245 = vmatprep.subr.mxu0 0.0
    %246 = vmatpush1.msra.mxu0 0.0
    %247 = vmatprep.subr.mxu0 0.0
    %248 = vmatpush1.msra.mxu0 0.0
    %249 = vmatprep.subr.mxu0 0.0
    %250 = vmatpush1.msra.mxu0 0.0
    %251 = vmatprep.subr.mxu0 0.0
    %252 = vmatpush1.msra.mxu0 0.0
    %253 = vmatprep.subr.mxu0 0.0
    %254 = vmatpush1.msra.mxu0 0.0
    %255 = vmatprep.subr.mxu0 0.0
    %256 = vmatpush1.msra.mxu0 0.0
    %257 = vmatprep.subr.mxu0 0.0
    %258 = vmatpush1.msra.mxu0 0.0
    %259 = vmatprep.subr.mxu0 0.0
    %260 = vmatpush1.msra.mxu0 0.0
    %261 = vmatprep.subr.mxu0 0.0
    %262 = vmatpush1.msra.mxu0 0.0
    %263 = vmatprep.subr.mxu0 0.0
    %264 = vmatpush1.msra.mxu0 0.0
    %265 = vmatprep.subr.mxu0 0.0
    %266 = vmatpush1.msra.mxu0 0.0
    %267 = vmatprep.subr.mxu0 0.0
    %268 = vmatpush1.msra.mxu0 0.0
    %269 = vmatprep.mubr.f32.mxu0 0.0
    %270 = vmatmul.mubr.f32.gmra.mrb[0].mxu0 %v125
    %v271 = vpop.f32.mrb[0].mxu0
    %v272 = vadd.f32 %v203, %v271
    %v273 = vpop.f32.mrb[0].mxu0
    %274 = vdwg.mxu0
    %v276 = vsel %vm123, %v75, 0
    %v279 = vsel %vm123, %v76, 0
    %281 = vmatprep.subr.mxu0 0.0
    %282 = vmatpush1.msra.mxu0 %v272
    %283 = vmatprep.subr.mxu0 0.0
    %284 = vmatpush1.msra.mxu0 0.0
    %285 = vmatprep.subr.mxu0 0.0
    %286 = vmatpush1.msra.mxu0 0.0
    %287 = vmatprep.subr.mxu0 0.0
    %288 = vmatpush1.msra.mxu0 0.0
    %289 = vmatprep.subr.mxu0 0.0
    %290 = vmatpush1.msra.mxu0 0.0
    %291 = vmatprep.subr.mxu0 0.0
    %292 = vmatpush1.msra.mxu0 0.0
    %293 = vmatprep.subr.mxu0 0.0
    %294 = vmatpush1.msra.mxu0 0.0
    %295 = vmatprep.subr.mxu0 0.0
    %296 = vmatpush1.msra.mxu0 0.0
    %297 = vmatprep.subr.mxu0 0.0
    %298 = vmatpush1.msra.mxu0 0.0
    %299 = vmatprep.subr.mxu0 0.0
    %300 = vmatpush1.msra.mxu0 0.0
    %301 = vmatprep.subr.mxu0 0.0
    %302 = vmatpush1.msra.mxu0 0.0
    %303 = vmatprep.subr.mxu0 0.0
    %304 = vmatpush1.msra.mxu0 0.0
    %305 = vmatprep.subr.mxu0 0.0
    %306 = vmatpush1.msra.mxu0 0.0
    %307 = vmatprep.subr.mxu0 0.0
    %308 = vmatpush1.msra.mxu0 0.0
    %309 = vmatprep.subr.mxu0 0.0
    %310 = vmatpush1.msra.mxu0 0.0
    %311 = vmatprep.subr.mxu0 0.0
    %312 = vmatpush1.msra.mxu0 0.0
    %313 = vmatprep.subr.mxu0 0.0
    %314 = vmatpush1.msra.mxu0 0.0
    %315 = vmatprep.subr.mxu0 0.0
    %316 = vmatpush1.msra.mxu0 0.0
    %317 = vmatprep.subr.mxu0 0.0
    %318 = vmatpush1.msra.mxu0 0.0
    %319 = vmatprep.subr.mxu0 0.0
    %320 = vmatpush1.msra.mxu0 0.0
    %321 = vmatprep.subr.mxu0 0.0
    %322 = vmatpush1.msra.mxu0 0.0
    %323 = vmatprep.subr.mxu0 0.0
    %324 = vmatpush1.msra.mxu0 0.0
    %325 = vmatprep.subr.mxu0 0.0
    %326 = vmatpush1.msra.mxu0 0.0
    %327 = vmatprep.subr.mxu0 0.0
    %328 = vmatpush1.msra.mxu0 0.0
    %329 = vmatprep.subr.mxu0 0.0
    %330 = vmatpush1.msra.mxu0 0.0
    %331 = vmatprep.subr.mxu0 0.0
    %332 = vmatpush1.msra.mxu0 0.0
    %333 = vmatprep.subr.mxu0 0.0
    %334 = vmatpush1.msra.mxu0 0.0
    %335 = vmatprep.subr.mxu0 0.0
    %336 = vmatpush1.msra.mxu0 0.0
    %337 = vmatprep.subr.mxu0 0.0
    %338 = vmatpush1.msra.mxu0 0.0
    %339 = vmatprep.subr.mxu0 0.0
    %340 = vmatpush1.msra.mxu0 0.0
    %341 = vmatprep.subr.mxu0 0.0
    %342 = vmatpush1.msra.mxu0 0.0
    %343 = vmatprep.subr.mxu0 0.0
    %344 = vmatpush1.msra.mxu0 0.0
    %345 = vmatprep.mubr.f32.mxu0 0.0
    %346 = vmatmul.mubr.f32.gmra.mrb[0].mxu0 %v276
    %v347 = vpop.f32.mrb[0].mxu0
    %v348 = vadd.f32 0.0, %v347
    %v349 = vpop.f32.mrb[0].mxu0
    %350 = vmatprep.mubr.f32.mxu0 0.0
    %351 = vmatmul.mubr.f32.gmra.mrb[0].mxu0 %v279
    %v352 = vpop.f32.mrb[0].mxu0
    %v353 = vadd.f32 0.0, %v352
    %v354 = vpop.f32.mrb[0].mxu0
    %355 = vdwg.mxu0
    %v356 = vld [vmem:[%s8] sm:$0xff]
    %v357 = vld [vmem:[%s8 + $0x8] sm:$0xff]
    %v358 = vld [vmem:[%s9] sm:$0x1]
    %v360 = vlaneseq
    %v361 = vshrl.u32 %v360, 7
    %v362 = vsub.s32 0, %v361
    %v363 = vrot.slane %v358, %v362
    %vm365 = vcmask 130048
    %v367 = vsel %vm365, %v113, 0
    %v370 = vsel %vm365, %v114, 0
    %372 = vmatprep.subr.mxu0 0.0
    %373 = vmatpush1.msra.mxu0 %v356
    %374 = vmatprep.subr.mxu0 0.0
    %375 = vmatpush1.msra.mxu0 %v357
    %376 = vmatprep.subr.mxu0 0.0
    %377 = vmatpush1.msra.mxu0 0.0
    %378 = vmatprep.subr.mxu0 0.0
    %379 = vmatpush1.msra.mxu0 0.0
    %380 = vmatprep.subr.mxu0 0.0
    %381 = vmatpush1.msra.mxu0 0.0
    %382 = vmatprep.subr.mxu0 0.0
    %383 = vmatpush1.msra.mxu0 0.0
    %384 = vmatprep.subr.mxu0 0.0
    %385 = vmatpush1.msra.mxu0 0.0
    %386 = vmatprep.subr.mxu0 0.0
    %387 = vmatpush1.msra.mxu0 0.0
    %388 = vmatprep.subr.mxu0 0.0
    %389 = vmatpush1.msra.mxu0 0.0
    %390 = vmatprep.subr.mxu0 0.0
    %391 = vmatpush1.msra.mxu0 0.0
    %392 = vmatprep.subr.mxu0 0.0
    %393 = vmatpush1.msra.mxu0 0.0
    %394 = vmatprep.subr.mxu0 0.0
    %395 = vmatpush1.msra.mxu0 0.0
    %396 = vmatprep.subr.mxu0 0.0
    %397 = vmatpush1.msra.mxu0 0.0
    %398 = vmatprep.subr.mxu0 0.0
    %399 = vmatpush1.msra.mxu0 0.0
    %400 = vmatprep.subr.mxu0 0.0
    %401 = vmatpush1.msra.mxu0 0.0
    %402 = vmatprep.subr.mxu0 0.0
    %403 = vmatpush1.msra.mxu0 0.0
    %404 = vmatprep.subr.mxu0 0.0
    %405 = vmatpush1.msra.mxu0 0.0
    %406 = vmatprep.subr.mxu0 0.0
    %407 = vmatpush1.msra.mxu0 0.0
    %408 = vmatprep.subr.mxu0 0.0
    %409 = vmatpush1.msra.mxu0 0.0
    %410 = vmatprep.subr.mxu0 0.0
    %411 = vmatpush1.msra.mxu0 0.0
    %412 = vmatprep.subr.mxu0 0.0
    %413 = vmatpush1.msra.mxu0 0.0
    %414 = vmatprep.subr.mxu0 0.0
    %415 = vmatpush1.msra.mxu0 0.0
    %416 = vmatprep.subr.mxu0 0.0
    %417 = vmatpush1.msra.mxu0 0.0
    %418 = vmatprep.subr.mxu0 0.0
    %419 = vmatpush1.msra.mxu0 0.0
    %420 = vmatprep.subr.mxu0 0.0
    %421 = vmatpush1.msra.mxu0 0.0
    %422 = vmatprep.subr.mxu0 0.0
    %423 = vmatpush1.msra.mxu0 0.0
    %424 = vmatprep.subr.mxu0 0.0
    %425 = vmatpush1.msra.mxu0 0.0
    %426 = vmatprep.subr.mxu0 0.0
    %427 = vmatpush1.msra.mxu0 0.0
    %428 = vmatprep.subr.mxu0 0.0
    %429 = vmatpush1.msra.mxu0 0.0
    %430 = vmatprep.subr.mxu0 0.0
    %431 = vmatpush1.msra.mxu0 0.0
    %432 = vmatprep.subr.mxu0 0.0
    %433 = vmatpush1.msra.mxu0 0.0
    %434 = vmatprep.subr.mxu0 0.0
    %435 = vmatpush1.msra.mxu0 0.0
    %436 = vmatprep.mubr.f32.mxu0 0.0
    %437 = vmatmul.mubr.f32.gmra.mrb[0].mxu0 %v367
    %v438 = vpop.f32.mrb[0].mxu0
    %v439 = vadd.f32 %v363, %v438
    %v440 = vpop.f32.mrb[0].mxu0
    %441 = vmatprep.mubr.f32.mxu0 0.0
    %442 = vmatmul.mubr.f32.gmra.mrb[0].mxu0 %v370
    %v443 = vpop.f32.mrb[0].mxu0
    %v444 = vadd.f32 %v363, %v443
    %v445 = vpop.f32.mrb[0].mxu0
    %446 = vdwg.mxu0
    %vm447 = vcmp.gt.f32.partialorder %v439, 0.0
    %vm448 = vcmp.gt.f32.partialorder %v444, 0.0
    %v449 = vmul.f32 %v439, 0.1
    %v450 = vmul.f32 %v444, 0.1
    %v451 = vsel %vm447, %v439, %v449
    %v452 = vsel %vm448, %v444, %v450
    %v453 = vld [vmem:[%s10] sm:$0xff]
    %v454 = vld [vmem:[%s10 + $0x8] sm:$0xff]
    %v455 = vld [vmem:[%s10 + $0x10] sm:$0xff]
    %v456 = vld [vmem:[%s10 + $0x18] sm:$0xff]
    %v457 = vld [vmem:[%s10 + $0x20] sm:$0xff]
    %v458 = vld [vmem:[%s10 + $0x28] sm:$0xff]
    %v459 = vld [vmem:[%s10 + $0x30] sm:$0xff]
    %v460 = vld [vmem:[%s10 + $0x38] sm:$0xff]
    %v461 = vld [vmem:[%s11] sm:$0x1]
    %v463 = vlaneseq
    %v464 = vshrl.u32 %v463, 7
    %v465 = vsub.s32 0, %v464
    %v466 = vrot.slane %v461, %v465
    %vm468 = vcmask 523264
    %v470 = vsel %vm468, %v451, 0
    %v473 = vsel %vm468, %v452, 0
    %475 = vmatprep.subr.mxu0 0.0
    %476 = vmatpush1.msra.mxu0 %v453
    %477 = vmatprep.subr.mxu0 0.0
    %478 = vmatpush1.msra.mxu0 %v454
    %479 = vmatprep.subr.mxu0 0.0
    %480 = vmatpush1.msra.mxu0 %v455
    %481 = vmatprep.subr.mxu0 0.0
    %482 = vmatpush1.msra.mxu0 %v456
    %483 = vmatprep.subr.mxu0 0.0
    %484 = vmatpush1.msra.mxu0 %v457
    %485 = vmatprep.subr.mxu0 0.0
    %486 = vmatpush1.msra.mxu0 %v458
    %487 = vmatprep.subr.mxu0 0.0
    %488 = vmatpush1.msra.mxu0 %v459
    %489 = vmatprep.subr.mxu0 0.0
    %490 = vmatpush1.msra.mxu0 %v460
    %491 = vmatprep.subr.mxu0 0.0
    %492 = vmatpush1.msra.mxu0 0.0
    %493 = vmatprep.subr.mxu0 0.0
    %494 = vmatpush1.msra.mxu0 0.0
    %495 = vmatprep.subr.mxu0 0.0
    %496 = vmatpush1.msra.mxu0 0.0
    %497 = vmatprep.subr.mxu0 0.0
    %498 = vmatpush1.msra.mxu0 0.0
    %499 = vmatprep.subr.mxu0 0.0
    %500 = vmatpush1.msra.mxu0 0.0
    %501 = vmatprep.subr.mxu0 0.0
    %502 = vmatpush1.msra.mxu0 0.0
    %503 = vmatprep.subr.mxu0 0.0
    %504 = vmatpush1.msra.mxu0 0.0
    %505 = vmatprep.subr.mxu0 0.0
    %506 = vmatpush1.msra.mxu0 0.0
    %507 = vmatprep.subr.mxu0 0.0
    %508 = vmatpush1.msra.mxu0 0.0
    %509 = vmatprep.subr.mxu0 0.0
    %510 = vmatpush1.msra.mxu0 0.0
    %511 = vmatprep.subr.mxu0 0.0
    %512 = vmatpush1.msra.mxu0 0.0
    %513 = vmatprep.subr.mxu0 0.0
    %514 = vmatpush1.msra.mxu0 0.0
    %515 = vmatprep.subr.mxu0 0.0
    %516 = vmatpush1.msra.mxu0 0.0
    %517 = vmatprep.subr.mxu0 0.0
    %518 = vmatpush1.msra.mxu0 0.0
    %519 = vmatprep.subr.mxu0 0.0
    %520 = vmatpush1.msra.mxu0 0.0
    %521 = vmatprep.subr.mxu0 0.0
    %522 = vmatpush1.msra.mxu0 0.0
    %523 = vmatprep.subr.mxu0 0.0
    %524 = vmatpush1.msra.mxu0 0.0
    %525 = vmatprep.subr.mxu0 0.0
    %526 = vmatpush1.msra.mxu0 0.0
    %527 = vmatprep.subr.mxu0 0.0
    %528 = vmatpush1.msra.mxu0 0.0
    %529 = vmatprep.subr.mxu0 0.0
    %530 = vmatpush1.msra.mxu0 0.0
    %531 = vmatprep.subr.mxu0 0.0
    %532 = vmatpush1.msra.mxu0 0.0
    %533 = vmatprep.subr.mxu0 0.0
    %534 = vmatpush1.msra.mxu0 0.0
    %535 = vmatprep.subr.mxu0 0.0
    %536 = vmatpush1.msra.mxu0 0.0
    %537 = vmatprep.subr.mxu0 0.0
    %538 = vmatpush1.msra.mxu0 0.0
    %539 = vmatprep.mubr.f32.mxu0 0.0
    %540 = vmatmul.mubr.f32.gmra.mrb[0].mxu0 %v470
    %v541 = vpop.f32.mrb[0].mxu0
    %v542 = vadd.f32 %v466, %v541
    %v543 = vpop.f32.mrb[0].mxu0
    %544 = vmatprep.mubr.f32.mxu0 0.0
    %545 = vmatmul.mubr.f32.gmra.mrb[0].mxu0 %v473
    %v546 = vpop.f32.mrb[0].mxu0
    %v547 = vadd.f32 %v466, %v546
    %v548 = vpop.f32.mrb[0].mxu0
    %549 = vdwg.mxu0
    %vm550 = vcmp.gt.f32.partialorder %v542, 0.0
    %vm551 = vcmp.gt.f32.partialorder %v547, 0.0
    %v552 = vmul.f32 %v542, 0.1
    %v553 = vmul.f32 %v547, 0.1
    %v554 = vsel %vm550, %v542, %v552
    %v555 = vsel %vm551, %v547, %v553
    %v556 = vld [vmem:[%s12] sm:$0xff]
    %v557 = vld [vmem:[%s13] sm:$0x1]
    %v559 = vlaneseq
    %v560 = vshrl.u32 %v559, 7
    %v561 = vsub.s32 0, %v560
    %v562 = vrot.slane %v557, %v561
    %v565 = vsel %vm123, %v554, 0
    %v568 = vsel %vm123, %v555, 0
    %570 = vmatprep.subr.mxu0 0.0
    %571 = vmatpush1.msra.mxu0 %v556
    %572 = vmatprep.subr.mxu0 0.0
    %573 = vmatpush1.msra.mxu0 0.0
    %574 = vmatprep.subr.mxu0 0.0
    %575 = vmatpush1.msra.mxu0 0.0
    %576 = vmatprep.subr.mxu0 0.0
    %577 = vmatpush1.msra.mxu0 0.0
    %578 = vmatprep.subr.mxu0 0.0
    %579 = vmatpush1.msra.mxu0 0.0
    %580 = vmatprep.subr.mxu0 0.0
    %581 = vmatpush1.msra.mxu0 0.0
    %582 = vmatprep.subr.mxu0 0.0
    %583 = vmatpush1.msra.mxu0 0.0
    %584 = vmatprep.subr.mxu0 0.0
    %585 = vmatpush1.msra.mxu0 0.0
    %586 = vmatprep.subr.mxu0 0.0
    %587 = vmatpush1.msra.mxu0 0.0
    %588 = vmatprep.subr.mxu0 0.0
    %589 = vmatpush1.msra.mxu0 0.0
    %590 = vmatprep.subr.mxu0 0.0
    %591 = vmatpush1.msra.mxu0 0.0
    %592 = vmatprep.subr.mxu0 0.0
    %593 = vmatpush1.msra.mxu0 0.0
    %594 = vmatprep.subr.mxu0 0.0
    %595 = vmatpush1.msra.mxu0 0.0
    %596 = vmatprep.subr.mxu0 0.0
    %597 = vmatpush1.msra.mxu0 0.0
    %598 = vmatprep.subr.mxu0 0.0
    %599 = vmatpush1.msra.mxu0 0.0
    %600 = vmatprep.subr.mxu0 0.0
    %601 = vmatpush1.msra.mxu0 0.0
    %602 = vmatprep.subr.mxu0 0.0
    %603 = vmatpush1.msra.mxu0 0.0
    %604 = vmatprep.subr.mxu0 0.0
    %605 = vmatpush1.msra.mxu0 0.0
    %606 = vmatprep.subr.mxu0 0.0
    %607 = vmatpush1.msra.mxu0 0.0
    %608 = vmatprep.subr.mxu0 0.0
    %609 = vmatpush1.msra.mxu0 0.0
    %610 = vmatprep.subr.mxu0 0.0
    %611 = vmatpush1.msra.mxu0 0.0
    %612 = vmatprep.subr.mxu0 0.0
    %613 = vmatpush1.msra.mxu0 0.0
    %614 = vmatprep.subr.mxu0 0.0
    %615 = vmatpush1.msra.mxu0 0.0
    %616 = vmatprep.subr.mxu0 0.0
    %617 = vmatpush1.msra.mxu0 0.0
    %618 = vmatprep.subr.mxu0 0.0
    %619 = vmatpush1.msra.mxu0 0.0
    %620 = vmatprep.subr.mxu0 0.0
    %621 = vmatpush1.msra.mxu0 0.0
    %622 = vmatprep.subr.mxu0 0.0
    %623 = vmatpush1.msra.mxu0 0.0
    %624 = vmatprep.subr.mxu0 0.0
    %625 = vmatpush1.msra.mxu0 0.0
    %626 = vmatprep.subr.mxu0 0.0
    %627 = vmatpush1.msra.mxu0 0.0
    %628 = vmatprep.subr.mxu0 0.0
    %629 = vmatpush1.msra.mxu0 0.0
    %630 = vmatprep.subr.mxu0 0.0
    %631 = vmatpush1.msra.mxu0 0.0
    %632 = vmatprep.subr.mxu0 0.0
    %633 = vmatpush1.msra.mxu0 0.0
    %634 = vmatprep.mubr.f32.mxu0 0.0
    %635 = vmatmul.mubr.f32.gmra.mrb[0].mxu0 %v565
    %v636 = vpop.f32.mrb[0].mxu0
    %v637 = vadd.f32 %v562, %v636
    %v638 = vpop.f32.mrb[0].mxu0
    %639 = vmatprep.mubr.f32.mxu0 0.0
    %640 = vmatmul.mubr.f32.gmra.mrb[0].mxu0 %v568
    %v641 = vpop.f32.mrb[0].mxu0
    %v642 = vadd.f32 %v562, %v641
    %v643 = vpop.f32.mrb[0].mxu0
    %644 = vdwg.mxu0
    %vm645 = vcmp.gt.f32.partialorder %v637, 20.0
    %vm646 = vcmp.gt.f32.partialorder %v642, 20.0
    %v647 = vmin.f32 %v637, 20.0
    %v648 = vmin.f32 %v642, 20.0
    %v649 = vmul.f32 %v647, 1.442695
    %v650 = vpow.pop %v649
    %v651 = vmul.f32 %v648, 1.442695
    %v652 = vpow.pop %v651
    %v653 = vadd.f32 %v650, 1.0
    %v654 = vadd.f32 %v652, 1.0
    %v655 = vlog2.pop %v653
    %v656 = vmul.f32 %v655, 0.6931472
    %v657 = vlog2.pop %v654
    %v658 = vmul.f32 %v657, 0.6931472
    %v659 = vsel %vm645, %v637, %v656
    %v660 = vsel %vm646, %v642, %v658
    %v661 = vmul.f32 %v659, %v348
    %v662 = vmul.f32 %v660, %v353
    %v664 = vsel %vm365, %v97, 0
    %666 = vmatprep.subr.mxu0 0.0
    %667 = vmatpush1.msra.mxu0 %v661
    %668 = vmatprep.subr.mxu0 0.0
    %669 = vmatpush1.msra.mxu0 %v662
    %670 = vmatprep.subr.mxu0 0.0
    %671 = vmatpush1.msra.mxu0 0.0
    %672 = vmatprep.subr.mxu0 0.0
    %673 = vmatpush1.msra.mxu0 0.0
    %674 = vmatprep.subr.mxu0 0.0
    %675 = vmatpush1.msra.mxu0 0.0
    %676 = vmatprep.subr.mxu0 0.0
    %677 = vmatpush1.msra.mxu0 0.0
    %678 = vmatprep.subr.mxu0 0.0
    %679 = vmatpush1.msra.mxu0 0.0
    %680 = vmatprep.subr.mxu0 0.0
    %681 = vmatpush1.msra.mxu0 0.0
    %682 = vmatprep.subr.mxu0 0.0
    %683 = vmatpush1.msra.mxu0 0.0
    %684 = vmatprep.subr.mxu0 0.0
    %685 = vmatpush1.msra.mxu0 0.0
    %686 = vmatprep.subr.mxu0 0.0
    %687 = vmatpush1.msra.mxu0 0.0
    %688 = vmatprep.subr.mxu0 0.0
    %689 = vmatpush1.msra.mxu0 0.0
    %690 = vmatprep.subr.mxu0 0.0
    %691 = vmatpush1.msra.mxu0 0.0
    %692 = vmatprep.subr.mxu0 0.0
    %693 = vmatpush1.msra.mxu0 0.0
    %694 = vmatprep.subr.mxu0 0.0
    %695 = vmatpush1.msra.mxu0 0.0
    %696 = vmatprep.subr.mxu0 0.0
    %697 = vmatpush1.msra.mxu0 0.0
    %698 = vmatprep.subr.mxu0 0.0
    %699 = vmatpush1.msra.mxu0 0.0
    %700 = vmatprep.subr.mxu0 0.0
    %701 = vmatpush1.msra.mxu0 0.0
    %702 = vmatprep.subr.mxu0 0.0
    %703 = vmatpush1.msra.mxu0 0.0
    %704 = vmatprep.subr.mxu0 0.0
    %705 = vmatpush1.msra.mxu0 0.0
    %706 = vmatprep.subr.mxu0 0.0
    %707 = vmatpush1.msra.mxu0 0.0
    %708 = vmatprep.subr.mxu0 0.0
    %709 = vmatpush1.msra.mxu0 0.0
    %710 = vmatprep.subr.mxu0 0.0
    %711 = vmatpush1.msra.mxu0 0.0
    %712 = vmatprep.subr.mxu0 0.0
    %713 = vmatpush1.msra.mxu0 0.0
    %714 = vmatprep.subr.mxu0 0.0
    %715 = vmatpush1.msra.mxu0 0.0
    %716 = vmatprep.subr.mxu0 0.0
    %717 = vmatpush1.msra.mxu0 0.0
    %718 = vmatprep.subr.mxu0 0.0
    %719 = vmatpush1.msra.mxu0 0.0
    %720 = vmatprep.subr.mxu0 0.0
    %721 = vmatpush1.msra.mxu0 0.0
    %722 = vmatprep.subr.mxu0 0.0
    %723 = vmatpush1.msra.mxu0 0.0
    %724 = vmatprep.subr.mxu0 0.0
    %725 = vmatpush1.msra.mxu0 0.0
    %726 = vmatprep.subr.mxu0 0.0
    %727 = vmatpush1.msra.mxu0 0.0
    %728 = vmatprep.subr.mxu0 0.0
    %729 = vmatpush1.msra.mxu0 0.0
    %730 = vmatprep.mubr.f32.mxu0 0.0
    %731 = vmatmul.mubr.f32.gmra.mrb[0].mxu0 %v664
    %v732 = vpop.f32.mrb[0].mxu0
    %v733 = vadd.f32 0.0, %v732
    %v734 = vpop.f32.mrb[0].mxu0
    %735 = vdwg.mxu0
    %v736 = vadd.f32 %v194, %v733
    %v737 = vsel %vm365, %v736, 0.0
    %738 = vadd.xlane.f32.xlu0 %v737
    %v739 = vpop.xlane.xlu0 %738
    %v740 = vrcp.pop 16.0
    %v741 = vmul.f32 %v739, %v740
    %v742 = vsub.f32 %v736, %v741
    %v743 = vmul.f32 %v742, %v742
    %v744 = vsel %vm365, %v743, 0.0
    %745 = vadd.xlane.f32.xlu0 %v744
    %v746 = vpop.xlane.xlu0 %745
    %v747 = vmul.f32 %v746, %v740
    %v748 = vadd.f32 %v747, 1e-05
    %v749 = vrsqrt.pop %v748
    %v750 = vmul.f32 %v742, %v749
    %v751 = vld [vmem:[%s14] sm:$0x1]
    %v753 = vlaneseq
    %v754 = vshrl.u32 %v753, 7
    %v755 = vsub.s32 0, %v754
    %v756 = vrot.slane %v751, %v755
    %v758 = vmul.f32 %v750, %v756
    %v759 = vld [vmem:[%s15] sm:$0x1]
    %v761 = vlaneseq
    %v762 = vshrl.u32 %v761, 7
    %v763 = vsub.s32 0, %v762
    %v764 = vrot.slane %v759, %v763
    %v766 = vadd.f32 %v758, %v764
    %v767 = vmax.f32 %v766, 0.0
    %v768 = vld [vmem:[%s16] sm:$0xff]
    %v769 = vld [vmem:[%s16 + $0x8] sm:$0xff]
    %v770 = vld [vmem:[%s17] sm:$0x1]
    %v772 = vlaneseq
    %v773 = vshrl.u32 %v772, 7
    %v774 = vsub.s32 0, %v773
    %v775 = vrot.slane %v770, %v774
    %v778 = vsel %vm365, %v767, 0
    %780 = vmatprep.subr.mxu0 0.0
    %781 = vmatpush1.msra.mxu0 %v768
    %782 = vmatprep.subr.mxu0 0.0
    %783 = vmatpush1.msra.mxu0 %v769
    %784 = vmatprep.subr.mxu0 0.0
    %785 = vmatpush1.msra.mxu0 0.0
    %786 = vmatprep.subr.mxu0 0.0
    %787 = vmatpush1.msra.mxu0 0.0
    %788 = vmatprep.subr.mxu0 0.0
    %789 = vmatpush1.msra.mxu0 0.0
    %790 = vmatprep.subr.mxu0 0.0
    %791 = vmatpush1.msra.mxu0 0.0
    %792 = vmatprep.subr.mxu0 0.0
    %793 = vmatpush1.msra.mxu0 0.0
    %794 = vmatprep.subr.mxu0 0.0
    %795 = vmatpush1.msra.mxu0 0.0
    %796 = vmatprep.subr.mxu0 0.0
    %797 = vmatpush1.msra.mxu0 0.0
    %798 = vmatprep.subr.mxu0 0.0
    %799 = vmatpush1.msra.mxu0 0.0
    %800 = vmatprep.subr.mxu0 0.0
    %801 = vmatpush1.msra.mxu0 0.0
    %802 = vmatprep.subr.mxu0 0.0
    %803 = vmatpush1.msra.mxu0 0.0
    %804 = vmatprep.subr.mxu0 0.0
    %805 = vmatpush1.msra.mxu0 0.0
    %806 = vmatprep.subr.mxu0 0.0
    %807 = vmatpush1.msra.mxu0 0.0
    %808 = vmatprep.subr.mxu0 0.0
    %809 = vmatpush1.msra.mxu0 0.0
    %810 = vmatprep.subr.mxu0 0.0
    %811 = vmatpush1.msra.mxu0 0.0
    %812 = vmatprep.subr.mxu0 0.0
    %813 = vmatpush1.msra.mxu0 0.0
    %814 = vmatprep.subr.mxu0 0.0
    %815 = vmatpush1.msra.mxu0 0.0
    %816 = vmatprep.subr.mxu0 0.0
    %817 = vmatpush1.msra.mxu0 0.0
    %818 = vmatprep.subr.mxu0 0.0
    %819 = vmatpush1.msra.mxu0 0.0
    %820 = vmatprep.subr.mxu0 0.0
    %821 = vmatpush1.msra.mxu0 0.0
    %822 = vmatprep.subr.mxu0 0.0
    %823 = vmatpush1.msra.mxu0 0.0
    %824 = vmatprep.subr.mxu0 0.0
    %825 = vmatpush1.msra.mxu0 0.0
    %826 = vmatprep.subr.mxu0 0.0
    %827 = vmatpush1.msra.mxu0 0.0
    %828 = vmatprep.subr.mxu0 0.0
    %829 = vmatpush1.msra.mxu0 0.0
    %830 = vmatprep.subr.mxu0 0.0
    %831 = vmatpush1.msra.mxu0 0.0
    %832 = vmatprep.subr.mxu0 0.0
    %833 = vmatpush1.msra.mxu0 0.0
    %834 = vmatprep.subr.mxu0 0.0
    %835 = vmatpush1.msra.mxu0 0.0
    %836 = vmatprep.subr.mxu0 0.0
    %837 = vmatpush1.msra.mxu0 0.0
    %838 = vmatprep.subr.mxu0 0.0
    %839 = vmatpush1.msra.mxu0 0.0
    %840 = vmatprep.subr.mxu0 0.0
    %841 = vmatpush1.msra.mxu0 0.0
    %842 = vmatprep.subr.mxu0 0.0
    %843 = vmatpush1.msra.mxu0 0.0
    %844 = vmatprep.mubr.f32.mxu0 0.0
    %845 = vmatmul.mubr.f32.gmra.mrb[0].mxu0 %v778
    %v846 = vpop.f32.mrb[0].mxu0
    %v847 = vadd.f32 %v775, %v846
    %v848 = vpop.f32.mrb[0].mxu0
    %849 = vdwg.mxu0
    %v850 = vld [vmem:[%s18] sm:$0xff]
    %v851 = vld [vmem:[%s18 + $0x8] sm:$0xff]
    %v852 = vld [vmem:[%s19] sm:$0x1]
    %v854 = vlaneseq
    %v855 = vshrl.u32 %v854, 7
    %v856 = vsub.s32 0, %v855
    %v857 = vrot.slane %v852, %v856
    %859 = vmatprep.subr.mxu0 0.0
    %860 = vmatpush1.msra.mxu0 %v850
    %861 = vmatprep.subr.mxu0 0.0
    %862 = vmatpush1.msra.mxu0 %v851
    %863 = vmatprep.subr.mxu0 0.0
    %864 = vmatpush1.msra.mxu0 0.0
    %865 = vmatprep.subr.mxu0 0.0
    %866 = vmatpush1.msra.mxu0 0.0
    %867 = vmatprep.subr.mxu0 0.0
    %868 = vmatpush1.msra.mxu0 0.0
    %869 = vmatprep.subr.mxu0 0.0
    %870 = vmatpush1.msra.mxu0 0.0
    %871 = vmatprep.subr.mxu0 0.0
    %872 = vmatpush1.msra.mxu0 0.0
    %873 = vmatprep.subr.mxu0 0.0
    %874 = vmatpush1.msra.mxu0 0.0
    %875 = vmatprep.subr.mxu0 0.0
    %876 = vmatpush1.msra.mxu0 0.0
    %877 = vmatprep.subr.mxu0 0.0
    %878 = vmatpush1.msra.mxu0 0.0
    %879 = vmatprep.subr.mxu0 0.0
    %880 = vmatpush1.msra.mxu0 0.0
    %881 = vmatprep.subr.mxu0 0.0
    %882 = vmatpush1.msra.mxu0 0.0
    %883 = vmatprep.subr.mxu0 0.0
    %884 = vmatpush1.msra.mxu0 0.0
    %885 = vmatprep.subr.mxu0 0.0
    %886 = vmatpush1.msra.mxu0 0.0
    %887 = vmatprep.subr.mxu0 0.0
    %888 = vmatpush1.msra.mxu0 0.0
    %889 = vmatprep.subr.mxu0 0.0
    %890 = vmatpush1.msra.mxu0 0.0
    %891 = vmatprep.subr.mxu0 0.0
    %892 = vmatpush1.msra.mxu0 0.0
    %893 = vmatprep.subr.mxu0 0.0
    %894 = vmatpush1.msra.mxu0 0.0
    %895 = vmatprep.subr.mxu0 0.0
    %896 = vmatpush1.msra.mxu0 0.0
    %897 = vmatprep.subr.mxu0 0.0
    %898 = vmatpush1.msra.mxu0 0.0
    %899 = vmatprep.subr.mxu0 0.0
    %900 = vmatpush1.msra.mxu0 0.0
    %901 = vmatprep.subr.mxu0 0.0
    %902 = vmatpush1.msra.mxu0 0.0
    %903 = vmatprep.subr.mxu0 0.0
    %904 = vmatpush1.msra.mxu0 0.0
    %905 = vmatprep.subr.mxu0 0.0
    %906 = vmatpush1.msra.mxu0 0.0
    %907 = vmatprep.subr.mxu0 0.0
    %908 = vmatpush1.msra.mxu0 0.0
    %909 = vmatprep.subr.mxu0 0.0
    %910 = vmatpush1.msra.mxu0 0.0
    %911 = vmatprep.subr.mxu0 0.0
    %912 = vmatpush1.msra.mxu0 0.0
    %913 = vmatprep.subr.mxu0 0.0
    %914 = vmatpush1.msra.mxu0 0.0
    %915 = vmatprep.subr.mxu0 0.0
    %916 = vmatpush1.msra.mxu0 0.0
    %917 = vmatprep.subr.mxu0 0.0
    %918 = vmatpush1.msra.mxu0 0.0
    %919 = vmatprep.subr.mxu0 0.0
    %920 = vmatpush1.msra.mxu0 0.0
    %921 = vmatprep.subr.mxu0 0.0
    %922 = vmatpush1.msra.mxu0 0.0
    %923 = vmatprep.mubr.f32.mxu0 0.0
    %924 = vmatmul.mubr.f32.gmra.mrb[0].mxu0 %v367
    %v925 = vpop.f32.mrb[0].mxu0
    %v926 = vadd.f32 %v857, %v925
    %v927 = vpop.f32.mrb[0].mxu0
    %928 = vmatprep.mubr.f32.mxu0 0.0
    %929 = vmatmul.mubr.f32.gmra.mrb[0].mxu0 %v370
    %v930 = vpop.f32.mrb[0].mxu0
    %v931 = vadd.f32 %v857, %v930
    %v932 = vpop.f32.mrb[0].mxu0
    %933 = vdwg.mxu0
    %934 = vmatprep.subr.mxu0 0.0
    %935 = vmatpush1.msra.mxu0 %v847
    %936 = vmatprep.subr.mxu0 0.0
    %937 = vmatpush1.msra.mxu0 0.0
    %938 = vmatprep.subr.mxu0 0.0
    %939 = vmatpush1.msra.mxu0 0.0
    %940 = vmatprep.subr.mxu0 0.0
    %941 = vmatpush1.msra.mxu0 0.0
    %942 = vmatprep.subr.mxu0 0.0
    %943 = vmatpush1.msra.mxu0 0.0
    %944 = vmatprep.subr.mxu0 0.0
    %945 = vmatpush1.msra.mxu0 0.0
    %946 = vmatprep.subr.mxu0 0.0
    %947 = vmatpush1.msra.mxu0 0.0
    %948 = vmatprep.subr.mxu0 0.0
    %949 = vmatpush1.msra.mxu0 0.0
    %950 = vmatprep.subr.mxu0 0.0
    %951 = vmatpush1.msra.mxu0 0.0
    %952 = vmatprep.subr.mxu0 0.0
    %953 = vmatpush1.msra.mxu0 0.0
    %954 = vmatprep.subr.mxu0 0.0
    %955 = vmatpush1.msra.mxu0 0.0
    %956 = vmatprep.subr.mxu0 0.0
    %957 = vmatpush1.msra.mxu0 0.0
    %958 = vmatprep.subr.mxu0 0.0
    %959 = vmatpush1.msra.mxu0 0.0
    %960 = vmatprep.subr.mxu0 0.0
    %961 = vmatpush1.msra.mxu0 0.0
    %962 = vmatprep.subr.mxu0 0.0
    %963 = vmatpush1.msra.mxu0 0.0
    %964 = vmatprep.subr.mxu0 0.0
    %965 = vmatpush1.msra.mxu0 0.0
    %966 = vmatprep.subr.mxu0 0.0
    %967 = vmatpush1.msra.mxu0 0.0
    %968 = vmatprep.subr.mxu0 0.0
    %969 = vmatpush1.msra.mxu0 0.0
    %970 = vmatprep.subr.mxu0 0.0
    %971 = vmatpush1.msra.mxu0 0.0
    %972 = vmatprep.subr.mxu0 0.0
    %973 = vmatpush1.msra.mxu0 0.0
    %974 = vmatprep.subr.mxu0 0.0
    %975 = vmatpush1.msra.mxu0 0.0
    %976 = vmatprep.subr.mxu0 0.0
    %977 = vmatpush1.msra.mxu0 0.0
    %978 = vmatprep.subr.mxu0 0.0
    %979 = vmatpush1.msra.mxu0 0.0
    %980 = vmatprep.subr.mxu0 0.0
    %981 = vmatpush1.msra.mxu0 0.0
    %982 = vmatprep.subr.mxu0 0.0
    %983 = vmatpush1.msra.mxu0 0.0
    %984 = vmatprep.subr.mxu0 0.0
    %985 = vmatpush1.msra.mxu0 0.0
    %986 = vmatprep.subr.mxu0 0.0
    %987 = vmatpush1.msra.mxu0 0.0
    %988 = vmatprep.subr.mxu0 0.0
    %989 = vmatpush1.msra.mxu0 0.0
    %990 = vmatprep.subr.mxu0 0.0
    %991 = vmatpush1.msra.mxu0 0.0
    %992 = vmatprep.subr.mxu0 0.0
    %993 = vmatpush1.msra.mxu0 0.0
    %994 = vmatprep.subr.mxu0 0.0
    %995 = vmatpush1.msra.mxu0 0.0
    %996 = vmatprep.subr.mxu0 0.0
    %997 = vmatpush1.msra.mxu0 0.0
    %998 = vmatprep.mubr.f32.mxu0 0.0
    %999 = vmatmul.mubr.f32.gmra.mrb[0].mxu0 %v276
    %v1000 = vpop.f32.mrb[0].mxu0
    %v1001 = vadd.f32 0.0, %v1000
    %v1002 = vpop.f32.mrb[0].mxu0
    %1003 = vmatprep.mubr.f32.mxu0 0.0
    %1004 = vmatmul.mubr.f32.gmra.mrb[0].mxu0 %v279
    %v1005 = vpop.f32.mrb[0].mxu0
    %v1006 = vadd.f32 0.0, %v1005
    %v1007 = vpop.f32.mrb[0].mxu0
    %1008 = vdwg.mxu0
    %v1009 = vadd.f32 %v1001, %v926
    %v1010 = vadd.f32 %v1006, %v931
    %v1011 = vld [vmem:[%s20] sm:$0xf]
    %vm1012 = vcmask 31744
    %v1014 = vsel %vm1012, %v1009, 0
    %v1017 = vsel %vm1012, %v1010, 0
    %vm1019 = vcmask 1043456
    %v1021 = vsel %vm1019, %v1011, 0
    %1023 = vmatprep.subr.mxu0 0.0
    %1024 = vmatpush1.msra.mxu0 %v1021
    %1025 = vmatprep.subr.mxu0 0.0
    %1026 = vmatpush1.msra.mxu0 0.0
    %1027 = vmatprep.subr.mxu0 0.0
    %1028 = vmatpush1.msra.mxu0 0.0
    %1029 = vmatprep.subr.mxu0 0.0
    %1030 = vmatpush1.msra.mxu0 0.0
    %1031 = vmatprep.subr.mxu0 0.0
    %1032 = vmatpush1.msra.mxu0 0.0
    %1033 = vmatprep.subr.mxu0 0.0
    %1034 = vmatpush1.msra.mxu0 0.0
    %1035 = vmatprep.subr.mxu0 0.0
    %1036 = vmatpush1.msra.mxu0 0.0
    %1037 = vmatprep.subr.mxu0 0.0
    %1038 = vmatpush1.msra.mxu0 0.0
    %1039 = vmatprep.subr.mxu0 0.0
    %1040 = vmatpush1.msra.mxu0 0.0
    %1041 = vmatprep.subr.mxu0 0.0
    %1042 = vmatpush1.msra.mxu0 0.0
    %1043 = vmatprep.subr.mxu0 0.0
    %1044 = vmatpush1.msra.mxu0 0.0
    %1045 = vmatprep.subr.mxu0 0.0
    %1046 = vmatpush1.msra.mxu0 0.0
    %1047 = vmatprep.subr.mxu0 0.0
    %1048 = vmatpush1.msra.mxu0 0.0
    %1049 = vmatprep.subr.mxu0 0.0
    %1050 = vmatpush1.msra.mxu0 0.0
    %1051 = vmatprep.subr.mxu0 0.0
    %1052 = vmatpush1.msra.mxu0 0.0
    %1053 = vmatprep.subr.mxu0 0.0
    %1054 = vmatpush1.msra.mxu0 0.0
    %1055 = vmatprep.subr.mxu0 0.0
    %1056 = vmatpush1.msra.mxu0 0.0
    %1057 = vmatprep.subr.mxu0 0.0
    %1058 = vmatpush1.msra.mxu0 0.0
    %1059 = vmatprep.subr.mxu0 0.0
    %1060 = vmatpush1.msra.mxu0 0.0
    %1061 = vmatprep.subr.mxu0 0.0
    %1062 = vmatpush1.msra.mxu0 0.0
    %1063 = vmatprep.subr.mxu0 0.0
    %1064 = vmatpush1.msra.mxu0 0.0
    %1065 = vmatprep.subr.mxu0 0.0
    %1066 = vmatpush1.msra.mxu0 0.0
    %1067 = vmatprep.subr.mxu0 0.0
    %1068 = vmatpush1.msra.mxu0 0.0
    %1069 = vmatprep.subr.mxu0 0.0
    %1070 = vmatpush1.msra.mxu0 0.0
    %1071 = vmatprep.subr.mxu0 0.0
    %1072 = vmatpush1.msra.mxu0 0.0
    %1073 = vmatprep.subr.mxu0 0.0
    %1074 = vmatpush1.msra.mxu0 0.0
    %1075 = vmatprep.subr.mxu0 0.0
    %1076 = vmatpush1.msra.mxu0 0.0
    %1077 = vmatprep.subr.mxu0 0.0
    %1078 = vmatpush1.msra.mxu0 0.0
    %1079 = vmatprep.subr.mxu0 0.0
    %1080 = vmatpush1.msra.mxu0 0.0
    %1081 = vmatprep.subr.mxu0 0.0
    %1082 = vmatpush1.msra.mxu0 0.0
    %1083 = vmatprep.subr.mxu0 0.0
    %1084 = vmatpush1.msra.mxu0 0.0
    %1085 = vmatprep.subr.mxu0 0.0
    %1086 = vmatpush1.msra.mxu0 0.0
    %1087 = vmatprep.mubr.f32.mxu0 0.0
    %1088 = vmatmul.mubr.f32.gmra.mrb[0].mxu0 %v1014
    %v1089 = vpop.f32.mrb[0].mxu0
    %v1090 = vadd.f32 0.0, %v1089
    %v1091 = vpop.f32.mrb[0].mxu0
    %1092 = vmatprep.mubr.f32.mxu0 0.0
    %1093 = vmatmul.mubr.f32.gmra.mrb[0].mxu0 %v1017
    %v1094 = vpop.f32.mrb[0].mxu0
    %v1095 = vadd.f32 0.0, %v1094
    %v1096 = vpop.f32.mrb[0].mxu0
    %1097 = vdwg.mxu0
    %vm1098 = vcmp.gt.f32.partialorder %v1090, 0.0
    %vm1099 = vcmp.gt.f32.partialorder %v1095, 0.0
    %v1100 = vmul.f32 %v1090, 0.01
    %v1101 = vmul.f32 %v1095, 0.01
    %v1102 = vsel %vm1098, %v1090, %v1100
    %v1103 = vsel %vm1099, %v1095, %v1101
    %vm1104 = vcmp.gt.f32.partialorder %v79, 0.0
    %vm1105 = vcmp.gt.f32.partialorder %v80, 0.0
    %1107 = vset.pattern.permute.xlu0 0
    %1108 = vperm.xlu0 %1107, %v1102
    %v1109 = vpop.permute.xlu0 %1108
    %1112 = vset.pattern.permute.xlu0 0
    %1113 = vperm.xlu0 %1112, %v1103
    %v1114 = vpop.permute.xlu0 %1113
    %v1116 = vsel %vm1104, %v1109, -1e+30
    %v1117 = vsel %vm1105, %v1114, -1e+30
    %v1118 = vsel %vm123, %v1116, -inf
    %v1119 = vsel %vm123, %v1117, -inf
    %v1120 = vmax.f32 %v1118, %v1119
    %v1121 = vrot.slane %v1120, 4
    %v1122 = vmax.f32 %v1120, %v1121
    %v1123 = vrot.slane %v1122, 2
    %v1124 = vmax.f32 %v1122, %v1123
    %v1125 = vrot.slane %v1124, 1
    %v1126 = vmax.f32 %v1124, %v1125
    %v1127 = vmul.f32 %v79, %v1126
    %v1128 = vmul.f32 %v80, %v1126
    %v1129 = vsel %vm123, %v1127, 0.0
    %1130 = vadd.xlane.f32.xlu0 %v1129
    %v1131 = vpop.xlane.xlu0 %1130
    %v1132 = vsel %vm123, %v1128, 0.0
    %1133 = vadd.xlane.f32.xlu0 %v1132
    %v1134 = vpop.xlane.xlu0 %1133
    %v1135 = vsub.f32 %v1102, %v1131
    %v1136 = vsub.f32 %v1103, %v1134
    %v1137 = vmul.f32 %v1135, 1.442695
    %v1138 = vpow.pop %v1137
    %v1139 = vmul.f32 %v1136, 1.442695
    %v1140 = vpow.pop %v1139
    %1141 = vmatprep.subr.mxu0 0.0
    %1142 = vmatpush1.msra.mxu0 %v1138
    %1143 = vmatprep.subr.mxu0 0.0
    %1144 = vmatpush1.msra.mxu0 %v1140
    %1145 = vmatprep.subr.mxu0 0.0
    %1146 = vmatpush1.msra.mxu0 0.0
    %1147 = vmatprep.subr.mxu0 0.0
    %1148 = vmatpush1.msra.mxu0 0.0
    %1149 = vmatprep.subr.mxu0 0.0
    %1150 = vmatpush1.msra.mxu0 0.0
    %1151 = vmatprep.subr.mxu0 0.0
    %1152 = vmatpush1.msra.mxu0 0.0
    %1153 = vmatprep.subr.mxu0 0.0
    %1154 = vmatpush1.msra.mxu0 0.0
    %1155 = vmatprep.subr.mxu0 0.0
    %1156 = vmatpush1.msra.mxu0 0.0
    %1157 = vmatprep.subr.mxu0 0.0
    %1158 = vmatpush1.msra.mxu0 0.0
    %1159 = vmatprep.subr.mxu0 0.0
    %1160 = vmatpush1.msra.mxu0 0.0
    %1161 = vmatprep.subr.mxu0 0.0
    %1162 = vmatpush1.msra.mxu0 0.0
    %1163 = vmatprep.subr.mxu0 0.0
    %1164 = vmatpush1.msra.mxu0 0.0
    %1165 = vmatprep.subr.mxu0 0.0
    %1166 = vmatpush1.msra.mxu0 0.0
    %1167 = vmatprep.subr.mxu0 0.0
    %1168 = vmatpush1.msra.mxu0 0.0
    %1169 = vmatprep.subr.mxu0 0.0
    %1170 = vmatpush1.msra.mxu0 0.0
    %1171 = vmatprep.subr.mxu0 0.0
    %1172 = vmatpush1.msra.mxu0 0.0
    %1173 = vmatprep.subr.mxu0 0.0
    %1174 = vmatpush1.msra.mxu0 0.0
    %1175 = vmatprep.subr.mxu0 0.0
    %1176 = vmatpush1.msra.mxu0 0.0
    %1177 = vmatprep.subr.mxu0 0.0
    %1178 = vmatpush1.msra.mxu0 0.0
    %1179 = vmatprep.subr.mxu0 0.0
    %1180 = vmatpush1.msra.mxu0 0.0
    %1181 = vmatprep.subr.mxu0 0.0
    %1182 = vmatpush1.msra.mxu0 0.0
    %1183 = vmatprep.subr.mxu0 0.0
    %1184 = vmatpush1.msra.mxu0 0.0
    %1185 = vmatprep.subr.mxu0 0.0
    %1186 = vmatpush1.msra.mxu0 0.0
    %1187 = vmatprep.subr.mxu0 0.0
    %1188 = vmatpush1.msra.mxu0 0.0
    %1189 = vmatprep.subr.mxu0 0.0
    %1190 = vmatpush1.msra.mxu0 0.0
    %1191 = vmatprep.subr.mxu0 0.0
    %1192 = vmatpush1.msra.mxu0 0.0
    %1193 = vmatprep.subr.mxu0 0.0
    %1194 = vmatpush1.msra.mxu0 0.0
    %1195 = vmatprep.subr.mxu0 0.0
    %1196 = vmatpush1.msra.mxu0 0.0
    %1197 = vmatprep.subr.mxu0 0.0
    %1198 = vmatpush1.msra.mxu0 0.0
    %1199 = vmatprep.subr.mxu0 0.0
    %1200 = vmatpush1.msra.mxu0 0.0
    %1201 = vmatprep.subr.mxu0 0.0
    %1202 = vmatpush1.msra.mxu0 0.0
    %1203 = vmatprep.subr.mxu0 0.0
    %1204 = vmatpush1.msra.mxu0 0.0
    %1205 = vmatprep.mubr.f32.mxu0 0.0
    %1206 = vmatmul.mubr.f32.gmra.mrb[0].mxu0 %v664
    %v1207 = vpop.f32.mrb[0].mxu0
    %v1208 = vadd.f32 0.0, %v1207
    %v1209 = vpop.f32.mrb[0].mxu0
    %1210 = vdwg.mxu0
    %v1212 = vsel %vm123, %v79, 0
    %v1215 = vsel %vm123, %v80, 0
    %1217 = vmatprep.subr.mxu0 0.0
    %1218 = vmatpush1.msra.mxu0 %v1208
    %1219 = vmatprep.subr.mxu0 0.0
    %1220 = vmatpush1.msra.mxu0 0.0
    %1221 = vmatprep.subr.mxu0 0.0
    %1222 = vmatpush1.msra.mxu0 0.0
    %1223 = vmatprep.subr.mxu0 0.0
    %1224 = vmatpush1.msra.mxu0 0.0
    %1225 = vmatprep.subr.mxu0 0.0
    %1226 = vmatpush1.msra.mxu0 0.0
    %1227 = vmatprep.subr.mxu0 0.0
    %1228 = vmatpush1.msra.mxu0 0.0
    %1229 = vmatprep.subr.mxu0 0.0
    %1230 = vmatpush1.msra.mxu0 0.0
    %1231 = vmatprep.subr.mxu0 0.0
    %1232 = vmatpush1.msra.mxu0 0.0
    %1233 = vmatprep.subr.mxu0 0.0
    %1234 = vmatpush1.msra.mxu0 0.0
    %1235 = vmatprep.subr.mxu0 0.0
    %1236 = vmatpush1.msra.mxu0 0.0
    %1237 = vmatprep.subr.mxu0 0.0
    %1238 = vmatpush1.msra.mxu0 0.0
    %1239 = vmatprep.subr.mxu0 0.0
    %1240 = vmatpush1.msra.mxu0 0.0
    %1241 = vmatprep.subr.mxu0 0.0
    %1242 = vmatpush1.msra.mxu0 0.0
    %1243 = vmatprep.subr.mxu0 0.0
    %1244 = vmatpush1.msra.mxu0 0.0
    %1245 = vmatprep.subr.mxu0 0.0
    %1246 = vmatpush1.msra.mxu0 0.0
    %1247 = vmatprep.subr.mxu0 0.0
    %1248 = vmatpush1.msra.mxu0 0.0
    %1249 = vmatprep.subr.mxu0 0.0
    %1250 = vmatpush1.msra.mxu0 0.0
    %1251 = vmatprep.subr.mxu0 0.0
    %1252 = vmatpush1.msra.mxu0 0.0
    %1253 = vmatprep.subr.mxu0 0.0
    %1254 = vmatpush1.msra.mxu0 0.0
    %1255 = vmatprep.subr.mxu0 0.0
    %1256 = vmatpush1.msra.mxu0 0.0
    %1257 = vmatprep.subr.mxu0 0.0
    %1258 = vmatpush1.msra.mxu0 0.0
    %1259 = vmatprep.subr.mxu0 0.0
    %1260 = vmatpush1.msra.mxu0 0.0
    %1261 = vmatprep.subr.mxu0 0.0
    %1262 = vmatpush1.msra.mxu0 0.0
    %1263 = vmatprep.subr.mxu0 0.0
    %1264 = vmatpush1.msra.mxu0 0.0
    %1265 = vmatprep.subr.mxu0 0.0
    %1266 = vmatpush1.msra.mxu0 0.0
    %1267 = vmatprep.subr.mxu0 0.0
    %1268 = vmatpush1.msra.mxu0 0.0
    %1269 = vmatprep.subr.mxu0 0.0
    %1270 = vmatpush1.msra.mxu0 0.0
    %1271 = vmatprep.subr.mxu0 0.0
    %1272 = vmatpush1.msra.mxu0 0.0
    %1273 = vmatprep.subr.mxu0 0.0
    %1274 = vmatpush1.msra.mxu0 0.0
    %1275 = vmatprep.subr.mxu0 0.0
    %1276 = vmatpush1.msra.mxu0 0.0
    %1277 = vmatprep.subr.mxu0 0.0
    %1278 = vmatpush1.msra.mxu0 0.0
    %1279 = vmatprep.subr.mxu0 0.0
    %1280 = vmatpush1.msra.mxu0 0.0
    %1281 = vmatprep.mubr.f32.mxu0 0.0
    %1282 = vmatmul.mubr.f32.gmra.mrb[0].mxu0 %v1212
    %v1283 = vpop.f32.mrb[0].mxu0
    %v1284 = vadd.f32 1e-16, %v1283
    %v1285 = vpop.f32.mrb[0].mxu0
    %1286 = vmatprep.mubr.f32.mxu0 0.0
    %1287 = vmatmul.mubr.f32.gmra.mrb[0].mxu0 %v1215
    %v1288 = vpop.f32.mrb[0].mxu0
    %v1289 = vadd.f32 1e-16, %v1288
    %v1290 = vpop.f32.mrb[0].mxu0
    %1291 = vdwg.mxu0
    %v1292 = vrcp.pop %v1284
    %v1293 = vmul.f32 %v1138, %v1292
    %v1294 = vrcp.pop %v1289
    %v1295 = vmul.f32 %v1140, %v1294
    %1297 = vset.pattern.permute.xlu0 0
    %1298 = vperm.xlu0 %1297, %v1293
    %v1299 = vpop.permute.xlu0 %1298
    %1302 = vset.pattern.permute.xlu0 0
    %1303 = vperm.xlu0 %1302, %v1295
    %v1304 = vpop.permute.xlu0 %1303
    %v1306 = vmul.f32 %v1001, %v1299
    %v1307 = vmul.f32 %v1006, %v1304
    %1308 = vmatprep.subr.mxu0 0.0
    %1309 = vmatpush1.msra.mxu0 %v1306
    %1310 = vmatprep.subr.mxu0 0.0
    %1311 = vmatpush1.msra.mxu0 %v1307
    %1312 = vmatprep.subr.mxu0 0.0
    %1313 = vmatpush1.msra.mxu0 0.0
    %1314 = vmatprep.subr.mxu0 0.0
    %1315 = vmatpush1.msra.mxu0 0.0
    %1316 = vmatprep.subr.mxu0 0.0
    %1317 = vmatpush1.msra.mxu0 0.0
    %1318 = vmatprep.subr.mxu0 0.0
    %1319 = vmatpush1.msra.mxu0 0.0
    %1320 = vmatprep.subr.mxu0 0.0
    %1321 = vmatpush1.msra.mxu0 0.0
    %1322 = vmatprep.subr.mxu0 0.0
    %1323 = vmatpush1.msra.mxu0 0.0
    %1324 = vmatprep.subr.mxu0 0.0
    %1325 = vmatpush1.msra.mxu0 0.0
    %1326 = vmatprep.subr.mxu0 0.0
    %1327 = vmatpush1.msra.mxu0 0.0
    %1328 = vmatprep.subr.mxu0 0.0
    %1329 = vmatpush1.msra.mxu0 0.0
    %1330 = vmatprep.subr.mxu0 0.0
    %1331 = vmatpush1.msra.mxu0 0.0
    %1332 = vmatprep.subr.mxu0 0.0
    %1333 = vmatpush1.msra.mxu0 0.0
    %1334 = vmatprep.subr.mxu0 0.0
    %1335 = vmatpush1.msra.mxu0 0.0
    %1336 = vmatprep.subr.mxu0 0.0
    %1337 = vmatpush1.msra.mxu0 0.0
    %1338 = vmatprep.subr.mxu0 0.0
    %1339 = vmatpush1.msra.mxu0 0.0
    %1340 = vmatprep.subr.mxu0 0.0
    %1341 = vmatpush1.msra.mxu0 0.0
    %1342 = vmatprep.subr.mxu0 0.0
    %1343 = vmatpush1.msra.mxu0 0.0
    %1344 = vmatprep.subr.mxu0 0.0
    %1345 = vmatpush1.msra.mxu0 0.0
    %1346 = vmatprep.subr.mxu0 0.0
    %1347 = vmatpush1.msra.mxu0 0.0
    %1348 = vmatprep.subr.mxu0 0.0
    %1349 = vmatpush1.msra.mxu0 0.0
    %1350 = vmatprep.subr.mxu0 0.0
    %1351 = vmatpush1.msra.mxu0 0.0
    %1352 = vmatprep.subr.mxu0 0.0
    %1353 = vmatpush1.msra.mxu0 0.0
    %1354 = vmatprep.subr.mxu0 0.0
    %1355 = vmatpush1.msra.mxu0 0.0
    %1356 = vmatprep.subr.mxu0 0.0
    %1357 = vmatpush1.msra.mxu0 0.0
    %1358 = vmatprep.subr.mxu0 0.0
    %1359 = vmatpush1.msra.mxu0 0.0
    %1360 = vmatprep.subr.mxu0 0.0
    %1361 = vmatpush1.msra.mxu0 0.0
    %1362 = vmatprep.subr.mxu0 0.0
    %1363 = vmatpush1.msra.mxu0 0.0
    %1364 = vmatprep.subr.mxu0 0.0
    %1365 = vmatpush1.msra.mxu0 0.0
    %1366 = vmatprep.subr.mxu0 0.0
    %1367 = vmatpush1.msra.mxu0 0.0
    %1368 = vmatprep.subr.mxu0 0.0
    %1369 = vmatpush1.msra.mxu0 0.0
    %1370 = vmatprep.subr.mxu0 0.0
    %1371 = vmatpush1.msra.mxu0 0.0
    %1372 = vmatprep.mubr.f32.mxu0 0.0
    %1373 = vmatmul.mubr.f32.gmra.mrb[0].mxu0 %v664
    %v1374 = vpop.f32.mrb[0].mxu0
    %v1375 = vadd.f32 0.0, %v1374
    %v1376 = vpop.f32.mrb[0].mxu0
    %1377 = vdwg.mxu0
    %v1378 = vsel %vm1012, %v1375, -inf
    %1379 = vmax.xlane.f32.xlu0 %v1378
    %v1380 = vpop.xlane.xlu0 %1379
    %v1381 = vsub.f32 %v1375, %v1380
    %v1382 = vmul.f32 %v1381, 1.442695
    %v1383 = vpow.pop %v1382
    %v1384 = vsel %vm1012, %v1383, 0.0
    %1385 = vadd.xlane.f32.xlu0 %v1384
    %v1386 = vpop.xlane.xlu0 %1385
    %v1387 = vrcp.pop %v1386
    %v1388 = vmul.f32 %v1383, %v1387
    %v1389 = vadd.f32 %v1388, 1e-08
    %v1390 = vrsqrt.pop %v1389
    %v1391 = vmul.f32 %v1389, %v1390
    %vm1392 = vcmp.eq.f32.partialorder %v1389, inf
    %v1393 = vsel %vm1392, %v1389, %v1391
    %vm1394 = vcmp.eq.f32.partialorder %v1389, 0.0
    %v1395 = vand.u32 %v1389, 2147483648
    %v1396 = vsel %vm1394, %v1395, %v1393
    %v1397 = vmul.f32 %v1396, %v1396
    %v1398 = vsel %vm1012, %v1397, 0.0
    %1399 = vadd.xlane.f32.xlu0 %v1398
    %v1400 = vpop.xlane.xlu0 %1399
    %v1401 = vrsqrt.pop %v1400
    %v1402 = vmul.f32 %v1400, %v1401
    %vm1403 = vcmp.eq.f32.partialorder %v1400, inf
    %v1404 = vsel %vm1403, %v1400, %v1402
    %vm1405 = vcmp.eq.f32.partialorder %v1400, 0.0
    %v1406 = vand.u32 %v1400, 2147483648
    %v1407 = vsel %vm1405, %v1406, %v1404
    %v1408 = vrcp.pop %v1407
    %v1409 = vmul.f32 %v1396, %v1408
    %v1410 = vld [vmem:[%s21] sm:$0xf]
    %v1412 = vsel %vm1012, %v1409, 0
    %v1415 = vsel %vm1019, %v1410, 0
    %1417 = vmatprep.subr.mxu0 0.0
    %1418 = vmatpush1.msra.mxu0 %v1415
    %1419 = vmatprep.subr.mxu0 0.0
    %1420 = vmatpush1.msra.mxu0 0.0
    %1421 = vmatprep.subr.mxu0 0.0
    %1422 = vmatpush1.msra.mxu0 0.0
    %1423 = vmatprep.subr.mxu0 0.0
    %1424 = vmatpush1.msra.mxu0 0.0
    %1425 = vmatprep.subr.mxu0 0.0
    %1426 = vmatpush1.msra.mxu0 0.0
    %1427 = vmatprep.subr.mxu0 0.0
    %1428 = vmatpush1.msra.mxu0 0.0
    %1429 = vmatprep.subr.mxu0 0.0
    %1430 = vmatpush1.msra.mxu0 0.0
    %1431 = vmatprep.subr.mxu0 0.0
    %1432 = vmatpush1.msra.mxu0 0.0
    %1433 = vmatprep.subr.mxu0 0.0
    %1434 = vmatpush1.msra.mxu0 0.0
    %1435 = vmatprep.subr.mxu0 0.0
    %1436 = vmatpush1.msra.mxu0 0.0
    %1437 = vmatprep.subr.mxu0 0.0
    %1438 = vmatpush1.msra.mxu0 0.0
    %1439 = vmatprep.subr.mxu0 0.0
    %1440 = vmatpush1.msra.mxu0 0.0
    %1441 = vmatprep.subr.mxu0 0.0
    %1442 = vmatpush1.msra.mxu0 0.0
    %1443 = vmatprep.subr.mxu0 0.0
    %1444 = vmatpush1.msra.mxu0 0.0
    %1445 = vmatprep.subr.mxu0 0.0
    %1446 = vmatpush1.msra.mxu0 0.0
    %1447 = vmatprep.subr.mxu0 0.0
    %1448 = vmatpush1.msra.mxu0 0.0
    %1449 = vmatprep.subr.mxu0 0.0
    %1450 = vmatpush1.msra.mxu0 0.0
    %1451 = vmatprep.subr.mxu0 0.0
    %1452 = vmatpush1.msra.mxu0 0.0
    %1453 = vmatprep.subr.mxu0 0.0
    %1454 = vmatpush1.msra.mxu0 0.0
    %1455 = vmatprep.subr.mxu0 0.0
    %1456 = vmatpush1.msra.mxu0 0.0
    %1457 = vmatprep.subr.mxu0 0.0
    %1458 = vmatpush1.msra.mxu0 0.0
    %1459 = vmatprep.subr.mxu0 0.0
    %1460 = vmatpush1.msra.mxu0 0.0
    %1461 = vmatprep.subr.mxu0 0.0
    %1462 = vmatpush1.msra.mxu0 0.0
    %1463 = vmatprep.subr.mxu0 0.0
    %1464 = vmatpush1.msra.mxu0 0.0
    %1465 = vmatprep.subr.mxu0 0.0
    %1466 = vmatpush1.msra.mxu0 0.0
    %1467 = vmatprep.subr.mxu0 0.0
    %1468 = vmatpush1.msra.mxu0 0.0
    %1469 = vmatprep.subr.mxu0 0.0
    %1470 = vmatpush1.msra.mxu0 0.0
    %1471 = vmatprep.subr.mxu0 0.0
    %1472 = vmatpush1.msra.mxu0 0.0
    %1473 = vmatprep.subr.mxu0 0.0
    %1474 = vmatpush1.msra.mxu0 0.0
    %1475 = vmatprep.subr.mxu0 0.0
    %1476 = vmatpush1.msra.mxu0 0.0
    %1477 = vmatprep.subr.mxu0 0.0
    %1478 = vmatpush1.msra.mxu0 0.0
    %1479 = vmatprep.subr.mxu0 0.0
    %1480 = vmatpush1.msra.mxu0 0.0
    %1481 = vmatprep.mubr.f32.mxu0 0.0
    %1482 = vmatmul.mubr.f32.gmra.mrb[0].mxu0 %v1412
    %v1483 = vpop.f32.mrb[0].mxu0
    %v1484 = vadd.f32 0.0, %v1483
    %v1485 = vpop.f32.mrb[0].mxu0
    %1486 = vdwg.mxu0
    %1487 = vst [vmem:[#allocation2] sm:$0xff] %v1484
    // Predicated region
    $region90: #{tpu_custom_call.1} parent=1 // pred_check
      _
    $region91: #{tpu_custom_call.1} parent=1 // pred_check_branch
      %1489 = sbr.rel (0) target = $region93
    $region92: #{tpu_custom_call.1} parent=1 // pred_region
      %s1491 = ssub.s32 128, 128
      %1492 = vsyncadd [#allocation3], %s1491
      %s1494 = sshll.u32 [#allocation2], 4
      %s1495 = int_to_ptr.vmem [resolvable:$true] %s1494
      %1497 = dma.vmem_to_hbm [thread:$0]  %s1495, 128, %s22, [#allocation3]
    $region93: #{tpu_custom_call.1} parent=1 // pred_fallthru
      _
    // Predicated region
    $region94: #{tpu_custom_call.1} parent=1 // pred_check
      _
    $region95: #{tpu_custom_call.1} parent=1 // pred_check_branch
      %1499 = sbr.rel (0) target = $region97
    $region96: #{tpu_custom_call.1} parent=1 // pred_region
      %1500 = dma.done [#allocation3], 128
    $region97: #{tpu_custom_call.1} parent=1 // pred_fallthru
      _
    %1501 = vsyncpa [#allocation3], 1

</llo_original>
